<compile_context>
chip_gen: v7x
topology: tpu7x:2x2x1
jax: 0.10.0
libtpu: 0.0.40
codegen_flags: <defaults>
</compile_context>

<pallas_src>
import functools

import jax
import jax.numpy as jnp
from jax.experimental import pallas as pl
from jax.experimental.pallas import tpu as pltpu


def _round_up(x, m):
    return (x + m - 1) // m * m


try:  # physical per-core VMEM, used to clamp vmem_limit_bytes per generation
    _VMEM_PHYS = int(getattr(pltpu.get_tpu_info(), "vmem_capacity_bytes", 64 * 2**20))
except Exception:  # conservative fallback = v7x per-core VMEM
    _VMEM_PHYS = 64 * 2**20


# ------------------------------ layout / packing -----------------------------


def make_layout(feat, attr, hidden, out):
    """Static slab layout (plain python ints, computed at trace time)."""
    F, F4 = feat, 4 * feat
    A = _round_up(max(attr, 1), 16)          # zero-pad contraction dim (bf16 sub-tile aligned)
    w_items = [("wk_a", A, F), ("wk_b", A, F),
               ("w1_a", F, F4), ("w2_a", F4, F),
               ("w1_b", F, F4), ("w2_b", F4, F),
               ("wg1", F, hidden), ("wg2", hidden, out)]
    w_lay, r = {}, 0
    for name, nr, nc in w_items:
        w_lay[name] = (r, nr, nc)
        r += _round_up(nr, 16)               # bf16 sublane-packing alignment
    w_rows = _round_up(r, 16)
    w_cols = _round_up(max(nc for _, _, nc in w_items), 128)
    v_widths = [("cb_a", F), ("b1_a", F4), ("b2_a", F),
                ("cb_b", F), ("b1_b", F4), ("b2_b", F),
                ("bg1", hidden), ("bg2", out)]
    v_lay = {name: (i, nc) for i, (name, nc) in enumerate(v_widths)}
    v_rows = _round_up(len(v_widths), 8)
    v_cols = _round_up(max(nc for _, nc in v_widths), 128)
    return dict(F=F, A=A, H=hidden, O=out,
                w_lay=w_lay, w_shape=(w_rows, w_cols),
                v_lay=v_lay, v_shape=(v_rows, v_cols))


def pack_params(params, lay):
    """Pack the 22 tensors into one bf16 weight slab + one f32 bias slab.

    Exact folds: LayerNorm affine -> linear_1, layer_scale -> linear_2."""
    def vec(p):
        return jnp.asarray(p, jnp.float32).reshape(1, -1)

    (wk1, cb1, lnw1, lnb1, w11, b11, w21, b21, ls1,
     wk2, cb2, lnw2, lnb2, w12, b12, w22, b22, ls2,
     wg1, bg1, wg2, bg2) = params
    wk1, w11, w21, wk2, w12, w22, wg1, wg2 = [
        jnp.asarray(p, jnp.float32) for p in (wk1, w11, w21, wk2, w12, w22, wg1, wg2)]
    cb1, lnw1, lnb1, b11, b21, ls1 = map(vec, (cb1, lnw1, lnb1, b11, b21, ls1))
    cb2, lnw2, lnb2, b12, b22, ls2 = map(vec, (cb2, lnw2, lnb2, b12, b22, ls2))
    bg1, bg2 = vec(bg1), vec(bg2)

    def fold(lnw, lnb, w1, b1, w2, b2, ls):
        w1f = w1 * lnw.reshape(-1, 1)        # LN weight into linear_1 rows
        b1f = lnb @ w1 + b1                  # LN bias into linear_1 bias
        w2f = w2 * ls                        # layer_scale into linear_2 cols
        b2f = b2 * ls
        return w1f, b1f, w2f, b2f

    w11f, b11f, w21f, b21f = fold(lnw1, lnb1, w11, b11, w21, b21, ls1)
    w12f, b12f, w22f, b22f = fold(lnw2, lnb2, w12, b12, w22, b22, ls2)

    A = lay["A"]

    def pad_attr_rows(wk):
        return jnp.zeros((A, wk.shape[1]), jnp.float32).at[:wk.shape[0]].set(wk)

    weights = dict(wk_a=pad_attr_rows(wk1), wk_b=pad_attr_rows(wk2),
                   w1_a=w11f, w2_a=w21f, w1_b=w12f, w2_b=w22f, wg1=wg1, wg2=wg2)
    vectors = dict(cb_a=cb1, b1_a=b11f, b2_a=b21f,
                   cb_b=cb2, b1_b=b12f, b2_b=b22f, bg1=bg1, bg2=bg2)

    w_slab = jnp.zeros(lay["w_shape"], jnp.bfloat16)
    for name, (r0, nr, nc) in lay["w_lay"].items():
        w_slab = w_slab.at[r0:r0 + nr, 0:nc].set(weights[name].astype(jnp.bfloat16))
    v_slab = jnp.zeros(lay["v_shape"], jnp.float32)
    for name, (row, nc) in lay["v_lay"].items():
        v_slab = v_slab.at[row, 0:nc].set(vectors[name].reshape(-1))
    return w_slab, v_slab


# ------------------------------ Pallas kernel ---------------------------------


def _mxu(a, b):
    """bf16 MXU matmul with f32 accumulation (exact for the 0/1 one-hot operands)."""
    return jnp.dot(a.astype(jnp.bfloat16), b.astype(jnp.bfloat16),
                   preferred_element_type=jnp.float32)


def _make_kernel(lay, n_pad, e_tile, num_graphs):
    def kernel(x_ref, ea_ref, src_ref, tgt_ref, batch_ref, w_ref, v_ref,
               o_ref, xcur_ref, acc_ref):
        layer = pl.program_id(0)
        tile = pl.program_id(1)
        last_tile = pl.num_programs(1) - 1

        def wsl(name):
            r0, nr, nc = lay["w_lay"][name]
            return w_ref[r0:r0 + nr, 0:nc]          # static slab slice

        v = v_ref[...]                               # tiny f32 bias slab, load once

        def vsl(name):
            row, nc = lay["v_lay"][name]
            return v[row:row + 1, 0:nc]

        sel_a = (layer == 0).astype(jnp.float32)     # arithmetic per-layer param select

        def pick(a, b):
            return sel_a * a.astype(jnp.float32) + (1.0 - sel_a) * b.astype(jnp.float32)

        # ---- very first grid step: load node features into the resident carry ----
        @pl.when((layer == 0) & (tile == 0))
        def _():
            xcur_ref[...] = x_ref[...]
            o_ref[...] = jnp.zeros_like(o_ref)

        # ---- start of each ConvNext layer: clear the scatter accumulator ----
        @pl.when(tile == 0)
        def _():
            acc_ref[...] = jnp.zeros_like(acc_ref)

        # ---- per-edge-tile depthwise conv: kernel(edge_attr) * x[src], scatter-add ----
        wk = pick(wsl("wk_a"), wsl("wk_b"))                                   # [A, F]
        kern = _mxu(ea_ref[...], wk)                                          # [TE, F]
        src = src_ref[...]                                                    # [TE, 1] int32
        tgt = tgt_ref[...]                                                    # [1, TE] int32
        gath = (jax.lax.broadcasted_iota(jnp.int32, (e_tile, n_pad), 1)
                == src).astype(jnp.float32)                                   # [TE, N] 0/1
        x_j = _mxu(gath, xcur_ref[...])                                       # gather x[src]
        msg = kern * x_j                                                      # f32 message
        scat = (jax.lax.broadcasted_iota(jnp.int32, (n_pad, e_tile), 0)
                == tgt).astype(jnp.float32)                                   # [N, TE] 0/1
        acc_ref[...] += _mxu(scat, msg)                                       # scatter-add

        # ---- end of each layer: bias + LayerNorm + MLP + residual (affine/scale folded) ----
        @pl.when(tile == last_tile)
        def _():
            agg = acc_ref[...] + pick(vsl("cb_a"), vsl("cb_b"))
            mu = jnp.mean(agg, axis=-1, keepdims=True)
            var = jnp.mean((agg - mu) ** 2, axis=-1, keepdims=True)
            xhat = (agg - mu) * jax.lax.rsqrt(var + 1e-5)
            h = jnp.maximum(_mxu(xhat, pick(wsl("w1_a"), wsl("w1_b")))
                            + pick(vsl("b1_a"), vsl("b1_b")), 0.0)
            h = _mxu(h, pick(wsl("w2_a"), wsl("w2_b"))) + pick(vsl("b2_a"), vsl("b2_b"))
            x_new = xcur_ref[...] + h                       # residual (layer_scale folded)
            xcur_ref[...] = x_new

            # ---- after the last layer: per-graph mean pool + graph MLP ----
            @pl.when(layer == pl.num_programs(0) - 1)
            def _():
                bidx = batch_ref[...]                        # [1, N] int32 (-1 = padding)
                pool = (jax.lax.broadcasted_iota(jnp.int32, (num_graphs, n_pad), 0)
                        == bidx).astype(jnp.float32)         # [G, N] 0/1
                counts = jnp.sum(pool, axis=-1, keepdims=True)
                g = _mxu(pool, x_new) / jnp.maximum(counts, 1.0)   # scatter_mean
                hg = jnp.maximum(_mxu(g, wsl("wg1")) + vsl("bg1"), 0.0)
                o_ref[...] = _mxu(hg, wsl("wg2")) + vsl("bg2")

    return kernel


# --------------------------------- wrapper ------------------------------------


@functools.partial(jax.jit,
                   static_argnames=("num_graphs", "out_dim", "hidden", "edge_tile"))
def pmhci_forward(x, edge_attr, edge_index, batch, w_slab, v_slab, *,
                  num_graphs, out_dim, hidden=128, edge_tile=512):
    n, feat = x.shape
    e, attr = edge_attr.shape
    lay = make_layout(feat, attr, hidden, out_dim)
    F, A = lay["F"], lay["A"]
    assert w_slab.shape == lay["w_shape"] and v_slab.shape == lay["v_shape"]

    # pad node / edge axes to TPU-friendly sizes; padding is numerically inert
    # (padded edges: zero edge_attr + src/tgt = -1; padded nodes: batch = -1)
    n_pad = _round_up(n, 8)
    te = min(_round_up(edge_tile, 128), _round_up(e, 128))
    e_pad = _round_up(e, te)
    num_tiles = e_pad // te

    x_p = jnp.zeros((n_pad, F), jnp.float32).at[:n, :].set(x.astype(jnp.float32))
    ea_p = jnp.zeros((e_pad, A), jnp.float32).at[:e, :attr].set(edge_attr.astype(jnp.float32))
    src_p = jnp.full((e_pad, 1), -1, jnp.int32).at[:e, 0].set(edge_index[0].astype(jnp.int32))
    tgt_p = jnp.full((1, e_pad), -1, jnp.int32).at[0, :e].set(edge_index[1].astype(jnp.int32))
    bat_p = jnp.full((1, n_pad), -1, jnp.int32).at[0, :n].set(batch.astype(jnp.int32))

    grid = (2, num_tiles)                       # (ConvNext layer, edge tile) - both sequential
    in_specs = [
        pl.BlockSpec((n_pad, F), lambda l, t: (0, 0)),        # x           (resident)
        pl.BlockSpec((te, A), lambda l, t: (t, 0)),           # edge_attr   (streamed tiles)
        pl.BlockSpec((te, 1), lambda l, t: (t, 0)),           # src indices (streamed tiles)
        pl.BlockSpec((1, te), lambda l, t: (0, t)),           # tgt indices (streamed tiles)
        pl.BlockSpec((1, n_pad), lambda l, t: (0, 0)),        # batch ids   (resident)
        pl.BlockSpec(lay["w_shape"], lambda l, t: (0, 0)),    # bf16 weight slab (resident)
        pl.BlockSpec(lay["v_shape"], lambda l, t: (0, 0)),    # f32 bias slab    (resident)
    ]
    out_specs = pl.BlockSpec((num_graphs, out_dim), lambda l, t: (0, 0))
    scratch = [pltpu.VMEM((n_pad, F), jnp.float32),           # node-feature carry across layers
               pltpu.VMEM((n_pad, F), jnp.float32)]           # conv scatter accumulator

    # per-generation VMEM budget (residents + double-buffered streamed tiles + temps)
    resident = (x_p.size * 4 + bat_p.size * 4 + w_slab.size * 2 + v_slab.size * 4
                + 2 * n_pad * F * 4 + num_graphs * out_dim * 4)
    streamed = 2 * (te * A * 4 + 2 * te * 4)
    temps = 4 * te * n_pad * 4
    vmem_bytes = int(min(_VMEM_PHYS * 7 // 8,
                         max(32 * 2**20, 2 * (resident + streamed + temps))))

    F4 = 4 * F
    flops = 2 * (2 * e_pad * A * F + 4 * e_pad * n_pad * F
                 + 2 * n_pad * F * F4 + 2 * n_pad * F4 * F
                 + num_graphs * n_pad * F
                 + num_graphs * F * hidden + num_graphs * hidden * out_dim)
    bytes_accessed = int(x_p.size * 4 + 2 * (ea_p.size * 4 + src_p.size * 4 + tgt_p.size * 4)
                         + bat_p.size * 4 + w_slab.size * 2 + v_slab.size * 4
                         + num_graphs * out_dim * 4)
    cost = pl.CostEstimate(flops=int(flops), transcendentals=int(2 * n_pad + num_graphs),
                           bytes_accessed=bytes_accessed)

    return pl.pallas_call(
        _make_kernel(lay, n_pad, te, num_graphs),
        grid=grid,
        in_specs=in_specs,
        out_specs=out_specs,
        out_shape=jax.ShapeDtypeStruct((num_graphs, out_dim), jnp.float32),
        scratch_shapes=scratch,
        compiler_params=pltpu.CompilerParams(
            dimension_semantics=("arbitrary", "arbitrary"),
            vmem_limit_bytes=vmem_bytes),
        cost_estimate=cost,
    )(x_p, ea_p, src_p, tgt_p, bat_p, w_slab, v_slab)


# --------------------------- pure-JAX reference --------------------------------


def pmhci_reference(x, edge_attr, edge_index, batch, params, *, num_graphs):
    """Module semantics from the RAW (unfolded) parameters, mirroring the kernel's
    bf16-matmul / f32-elementwise precision so fold/pack bugs are caught."""
    (wk1, cb1, lnw1, lnb1, w11, b11, w21, b21, ls1,
     wk2, cb2, lnw2, lnb2, w12, b12, w22, b22, ls2,
     wg1, bg1, wg2, bg2) = params
    src, tgt = edge_index[0], edge_index[1]
    n = x.shape[0]

    def mm(a, b):
        return jnp.dot(a.astype(jnp.bfloat16), b.astype(jnp.bfloat16),
                       preferred_element_type=jnp.float32)

    gath = (src[:, None] == jnp.arange(n)[None, :]).astype(jnp.float32)
    scat = (jnp.arange(n)[:, None] == tgt[None, :]).astype(jnp.float32)

    def layer(xin, wk, cb, lnw, lnb, w1, b1, w2, b2, ls):
        kern = mm(edge_attr, wk)
        x_j = mm(gath, xin)
        agg = mm(scat, kern * x_j) + cb
        mu = jnp.mean(agg, axis=-1, keepdims=True)
        var = jnp.mean((agg - mu) ** 2, axis=-1, keepdims=True)
        h = (agg - mu) * jax.lax.rsqrt(var + 1e-5) * lnw + lnb
        h = jnp.maximum(mm(h, w1) + b1, 0.0)
        h = mm(h, w2) + b2
        return ls * h + xin

    x1 = layer(x, wk1, cb1, lnw1, lnb1, w11, b11, w21, b21, ls1)
    x2 = layer(x1, wk2, cb2, lnw2, lnb2, w12, b12, w22, b22, ls2)
    pool = (jnp.arange(num_graphs)[:, None] == batch[None, :]).astype(jnp.float32)
    counts = jnp.sum(pool, axis=1, keepdims=True)
    g = mm(pool, x2) / jnp.maximum(counts, 1.0)
    h = jnp.maximum(mm(g, wg1) + bg1, 0.0)
    return mm(h, wg2) + bg2


# --------------------------- parameter init ------------------------------------


def init_params(key, feat_dim, attr_dim, hidden=128, out_dim=1):
    """Synthetic parameters matching the module's shapes.
    Linear weights pre-transposed as [in, out]; biases/scales as [1, out]."""
    def dense(k, fan_in, fan_out, scale=0.1):
        return scale * jax.random.normal(k, (fan_in, fan_out), jnp.float32)

    params = []
    keys = jax.random.split(key, 16)
    ki = iter(keys)
    for _ in range(2):                                           # two ConvNextLayers
        wk = dense(next(ki), attr_dim, feat_dim)                 # Conv kernel (depthwise, no bias)
        cbias = jnp.zeros((1, feat_dim), jnp.float32)            # Conv bias (zero init)
        lnw = jnp.ones((1, feat_dim), jnp.float32)               # LayerNorm weight
        lnb = jnp.zeros((1, feat_dim), jnp.float32)              # LayerNorm bias
        w1 = dense(next(ki), feat_dim, 4 * feat_dim)             # linear_1
        b1 = 0.01 * jnp.ones((1, 4 * feat_dim), jnp.float32)
        w2 = dense(next(ki), 4 * feat_dim, feat_dim)             # linear_2
        b2 = 0.01 * jnp.ones((1, feat_dim), jnp.float32)
        ls = 1e-6 * jnp.ones((1, feat_dim), jnp.float32)         # layer_scale
        params += [wk, cbias, lnw, lnb, w1, b1, w2, b2, ls]
    wg1 = dense(next(ki), feat_dim, hidden)                      # graph MLP
    bg1 = 0.01 * jnp.ones((1, hidden), jnp.float32)
    wg2 = dense(next(ki), hidden, out_dim)
    bg2 = 0.01 * jnp.ones((1, out_dim), jnp.float32)
    params += [wg1, bg1, wg2, bg2]
    return tuple(params)


# ----------------------------------- main --------------------------------------


if __name__ == "__main__":
    N_NODES = 16        # nodes
    N_EDGES = 32        # edges
    FEAT = 32           # input_shape (node feature dim)
    ATTR = 8            # input_shape_edge (edge feature dim)
    GRAPHS = 2          # graphs in the batch
    OUT = 1             # output_shape per graph
    HIDDEN = 128        # graph MLP hidden size

    key = jax.random.PRNGKey(0)
    kx, ke, ks, kt, kp = jax.random.split(key, 5)

    x = jax.random.normal(kx, (N_NODES, FEAT), jnp.float32)
    edge_attr = jax.random.normal(ke, (N_EDGES, ATTR), jnp.float32)
    src = jax.random.randint(ks, (N_EDGES,), 0, N_NODES, jnp.int32)
    tgt = jax.random.randint(kt, (N_EDGES,), 0, N_NODES, jnp.int32)
    edge_index = jnp.stack([src, tgt], axis=0)                     # [2, E]
    batch = jnp.concatenate([jnp.zeros(N_NODES // 2, jnp.int32),
                             jnp.ones(N_NODES - N_NODES // 2, jnp.int32)])

    params = init_params(kp, FEAT, ATTR, hidden=HIDDEN, out_dim=OUT)

    # Pack (with LN-affine / layer_scale folds) ONCE, outside the forward jit.
    lay = make_layout(FEAT, ATTR, HIDDEN, OUT)
    w_slab, v_slab = pack_params(params, lay)
    w_slab = jax.block_until_ready(w_slab)
    v_slab = jax.block_until_ready(v_slab)

    out = pmhci_forward(x, edge_attr, edge_index, batch, w_slab, v_slab,
                        num_graphs=GRAPHS, out_dim=OUT, hidden=HIDDEN)
    out = jax.block_until_ready(out)

    ref = pmhci_reference(x, edge_attr, edge_index, batch, params, num_graphs=GRAPHS)
    assert out.shape == (GRAPHS, OUT)
    assert jnp.allclose(out, ref, atol=2e-3, rtol=2e-3), (out, ref)

    print("KERNEL_OK")
</pallas_src>

<mosaic_0001>
module attributes {stable_mosaic.version = 11 : i64} {
  func.func @kernel(%arg0: i32, %arg1: i32, %arg2: memref<16x32xf32, #tpu.memory_space<vmem>>, %arg3: memref<128x16xf32, #tpu.memory_space<vmem>>, %arg4: memref<128x1xi32, #tpu.memory_space<vmem>>, %arg5: memref<1x128xi32, #tpu.memory_space<vmem>>, %arg6: memref<1x16xi32, #tpu.memory_space<vmem>>, %arg7: memref<512x128xbf16, #tpu.memory_space<vmem>>, %arg8: memref<8x128xf32, #tpu.memory_space<vmem>>, %arg9: memref<2x1xf32, #tpu.memory_space<vmem>>, %arg10: memref<16x32xf32, #tpu.memory_space<vmem>>, %arg11: memref<16x32xf32, #tpu.memory_space<vmem>>) attributes {dimension_semantics = [#tpu.dimension_semantics<arbitrary>, #tpu.dimension_semantics<arbitrary>], iteration_bounds = array<i64: 2, 1>, scalar_prefetch = 0 : i64, scratch_operands = 2 : i64, tpu.core_type = #tpu.core_type<tc>, window_params = [{pipeline_mode = #tpu.pipeline_mode<synchronous>, transform_indices = @transform_0, window_bounds = array<i64: 16, 32>}, {transform_indices = @transform_1, window_bounds = array<i64: 128, 16>}, {transform_indices = @transform_2, window_bounds = array<i64: 128, 1>}, {transform_indices = @transform_3, window_bounds = array<i64: 1, 128>}, {pipeline_mode = #tpu.pipeline_mode<synchronous>, transform_indices = @transform_4, window_bounds = array<i64: 1, 16>}, {pipeline_mode = #tpu.pipeline_mode<synchronous>, transform_indices = @transform_5, window_bounds = array<i64: 512, 128>}, {pipeline_mode = #tpu.pipeline_mode<synchronous>, transform_indices = @transform_6, window_bounds = array<i64: 8, 128>}, {pipeline_mode = #tpu.pipeline_mode<synchronous>, transform_indices = @transform_7, window_bounds = array<i64: 2, 1>}]} {
    %c0 = arith.constant 0 : index
    %c0_0 = arith.constant 0 : index
    %0 = vector.load %arg8[%c0, %c0_0] : memref<8x128xf32, #tpu.memory_space<vmem>>, vector<8x128xf32>
    %c0_i32 = arith.constant 0 : i32
    %1 = arith.cmpi eq, %arg0, %c0_i32 : i32
    %2 = arith.extui %1 : i1 to i32
    %3 = arith.sitofp %2 : i32 to f32
    %c0_i32_1 = arith.constant 0 : i32
    %4 = arith.cmpi eq, %arg0, %c0_i32_1 : i32
    %c0_i32_2 = arith.constant 0 : i32
    %5 = arith.cmpi eq, %arg1, %c0_i32_2 : i32
    %6 = arith.andi %4, %5 : i1
    %7 = arith.extui %6 : i1 to i32
    %c0_i32_3 = arith.constant 0 : i32
    %8 = arith.cmpi ne, %7, %c0_i32_3 : i32
    scf.if %8 {
      %c0_26 = arith.constant 0 : index
      %c0_27 = arith.constant 0 : index
      %52 = vector.load %arg2[%c0_26, %c0_27] : memref<16x32xf32, #tpu.memory_space<vmem>>, vector<16x32xf32>
      %c0_28 = arith.constant 0 : index
      %c0_29 = arith.constant 0 : index
      %53 = vector.load %arg10[%c0_28, %c0_29] : memref<16x32xf32, #tpu.memory_space<vmem>>, vector<16x32xf32>
      tpu.vector_store %arg10[%c0_28, %c0_29], %52 {strides = array<i32>} : memref<16x32xf32, #tpu.memory_space<vmem>>, vector<16x32xf32>,
      %cst_30 = arith.constant 0.000000e+00 : f32
      %54 = vector.broadcast %cst_30 : f32 to vector<2x1xf32>
      %c0_31 = arith.constant 0 : index
      %c0_32 = arith.constant 0 : index
      %55 = vector.load %arg9[%c0_31, %c0_32] : memref<2x1xf32, #tpu.memory_space<vmem>>, vector<2x1xf32>
      tpu.vector_store %arg9[%c0_31, %c0_32], %54 {strides = array<i32>} : memref<2x1xf32, #tpu.memory_space<vmem>>, vector<2x1xf32>,
    } else {
    }
    %c0_i32_4 = arith.constant 0 : i32
    %9 = arith.cmpi eq, %arg1, %c0_i32_4 : i32
    %10 = arith.extui %9 : i1 to i32
    %c0_i32_5 = arith.constant 0 : i32
    %11 = arith.cmpi ne, %10, %c0_i32_5 : i32
    scf.if %11 {
      %cst_26 = arith.constant 0.000000e+00 : f32
      %52 = vector.broadcast %cst_26 : f32 to vector<16x32xf32>
      %c0_27 = arith.constant 0 : index
      %c0_28 = arith.constant 0 : index
      %53 = vector.load %arg11[%c0_27, %c0_28] : memref<16x32xf32, #tpu.memory_space<vmem>>, vector<16x32xf32>
      tpu.vector_store %arg11[%c0_27, %c0_28], %52 {strides = array<i32>} : memref<16x32xf32, #tpu.memory_space<vmem>>, vector<16x32xf32>,
    } else {
    }
    %c0_6 = arith.constant 0 : index
    %c0_7 = arith.constant 0 : index
    %12 = vector.load %arg7[%c0_6, %c0_7] : memref<512x128xbf16, #tpu.memory_space<vmem>>, vector<16x32xbf16>
    %c16 = arith.constant 16 : index
    %c0_8 = arith.constant 0 : index
    %13 = vector.load %arg7[%c16, %c0_8] : memref<512x128xbf16, #tpu.memory_space<vmem>>, vector<16x32xbf16>
    %14 = arith.extf %12 : vector<16x32xbf16> to vector<16x32xf32>
    %15 = vector.broadcast %3 : f32 to vector<16x32xf32>
    %16 = arith.mulf %15, %14 : vector<16x32xf32>
    %cst = arith.constant 1.000000e+00 : f32
    %17 = arith.subf %cst, %3 : f32
    %18 = arith.extf %13 : vector<16x32xbf16> to vector<16x32xf32>
    %19 = vector.broadcast %17 : f32 to vector<16x32xf32>
    %20 = arith.mulf %19, %18 : vector<16x32xf32>
    %21 = arith.addf %16, %20 : vector<16x32xf32>
    %c0_9 = arith.constant 0 : index
    %c0_10 = arith.constant 0 : index
    %22 = vector.load %arg3[%c0_9, %c0_10] : memref<128x16xf32, #tpu.memory_space<vmem>>, vector<128x16xf32>
    %23 = arith.truncf %22 : vector<128x16xf32> to vector<128x16xbf16>
    %24 = arith.truncf %21 : vector<16x32xf32> to vector<16x32xbf16>
    %cst_11 = arith.constant dense<0.000000e+00> : vector<128x32xf32>
    %25 = tpu.matmul %23, %24, %cst_11 {dimension_numbers = #tpu.dot_dimension_numbers<[1], [0], [0], [1], [0, 0, 1, 1], [], []>} : vector<128x16xbf16>, vector<16x32xbf16>, vector<128x32xf32> -> vector<128x32xf32>
    %c0_12 = arith.constant 0 : index
    %c0_13 = arith.constant 0 : index
    %26 = vector.load %arg4[%c0_12, %c0_13] : memref<128x1xi32, #tpu.memory_space<vmem>>, vector<128x1xi32>
    %c0_14 = arith.constant 0 : index
    %c0_15 = arith.constant 0 : index
    %27 = vector.load %arg5[%c0_14, %c0_15] : memref<1x128xi32, #tpu.memory_space<vmem>>, vector<1x128xi32>
    %28 = tpu.iota {dimensions = array<i32: 1>} : vector<128x16xi32>
    %29 = vector.broadcast %26 : vector<128x1xi32> to vector<128x16xi32>
    %30 = arith.cmpi eq, %28, %29 : vector<128x16xi32>
    %31 = arith.extui %30 : vector<128x16xi1> to vector<128x16xi32>
    %32 = arith.sitofp %31 : vector<128x16xi32> to vector<128x16xf32>
    %c0_16 = arith.constant 0 : index
    %c0_17 = arith.constant 0 : index
    %33 = vector.load %arg10[%c0_16, %c0_17] : memref<16x32xf32, #tpu.memory_space<vmem>>, vector<16x32xf32>
    %34 = arith.truncf %32 : vector<128x16xf32> to vector<128x16xbf16>
    %35 = arith.truncf %33 : vector<16x32xf32> to vector<16x32xbf16>
    %cst_18 = arith.constant dense<0.000000e+00> : vector<128x32xf32>
    %36 = tpu.matmul %34, %35, %cst_18 {dimension_numbers = #tpu.dot_dimension_numbers<[1], [0], [0], [1], [0, 0, 1, 1], [], []>} : vector<128x16xbf16>, vector<16x32xbf16>, vector<128x32xf32> -> vector<128x32xf32>
    %37 = arith.mulf %25, %36 : vector<128x32xf32>
    %38 = tpu.iota {dimensions = array<i32: 0>} : vector<16x128xi32>
    %39 = vector.broadcast %27 : vector<1x128xi32> to vector<16x128xi32>
    %40 = arith.cmpi eq, %38, %39 : vector<16x128xi32>
    %41 = arith.extui %40 : vector<16x128xi1> to vector<16x128xi32>
    %42 = arith.sitofp %41 : vector<16x128xi32> to vector<16x128xf32>
    %c0_19 = arith.constant 0 : index
    %c0_20 = arith.constant 0 : index
    %43 = vector.load %arg11[%c0_19, %c0_20] : memref<16x32xf32, #tpu.memory_space<vmem>>, vector<16x32xf32>
    %44 = arith.truncf %42 : vector<16x128xf32> to vector<16x128xbf16>
    %45 = arith.truncf %37 : vector<128x32xf32> to vector<128x32xbf16>
    %cst_21 = arith.constant dense<0.000000e+00> : vector<16x32xf32>
    %46 = tpu.matmul %44, %45, %cst_21 {dimension_numbers = #tpu.dot_dimension_numbers<[1], [0], [0], [1], [0, 0, 1, 1], [], []>} : vector<16x128xbf16>, vector<128x32xbf16>, vector<16x32xf32> -> vector<16x32xf32>
    %47 = arith.addf %43, %46 : vector<16x32xf32>
    %c0_22 = arith.constant 0 : index
    %c0_23 = arith.constant 0 : index
    %48 = vector.load %arg11[%c0_22, %c0_23] : memref<16x32xf32, #tpu.memory_space<vmem>>, vector<16x32xf32>
    tpu.vector_store %arg11[%c0_22, %c0_23], %47 {strides = array<i32>} : memref<16x32xf32, #tpu.memory_space<vmem>>, vector<16x32xf32>,
    %c0_i32_24 = arith.constant 0 : i32
    %49 = arith.cmpi eq, %arg1, %c0_i32_24 : i32
    %50 = arith.extui %49 : i1 to i32
    %c0_i32_25 = arith.constant 0 : i32
    %51 = arith.cmpi ne, %50, %c0_i32_25 : i32
    scf.if %51 {
      %c0_26 = arith.constant 0 : index
      %c0_27 = arith.constant 0 : index
      %52 = vector.load %arg11[%c0_26, %c0_27] : memref<16x32xf32, #tpu.memory_space<vmem>>, vector<16x32xf32>
      %53 = vector.extract_strided_slice %0 {offsets = [0, 0], sizes = [1, 32], strides = [1, 1]} : vector<8x128xf32> to vector<1x32xf32>
      %54 = vector.extract_strided_slice %0 {offsets = [3, 0], sizes = [1, 32], strides = [1, 1]} : vector<8x128xf32> to vector<1x32xf32>
      %55 = vector.broadcast %3 : f32 to vector<1x32xf32>
      %56 = arith.mulf %55, %53 : vector<1x32xf32>
      %cst_28 = arith.constant 1.000000e+00 : f32
      %57 = arith.subf %cst_28, %3 : f32
      %58 = vector.broadcast %57 : f32 to vector<1x32xf32>
      %59 = arith.mulf %58, %54 : vector<1x32xf32>
      %60 = arith.addf %56, %59 : vector<1x32xf32>
      %61 = vector.broadcast %60 : vector<1x32xf32> to vector<16x32xf32>
      %62 = arith.addf %52, %61 : vector<16x32xf32>
      %cst_29 = arith.constant dense<0.000000e+00> : vector<16xf32>
      %63 = vector.multi_reduction <add>, %62, %cst_29 [1] : vector<16x32xf32> to vector<16xf32>
      %64 = vector.shape_cast %63 : vector<16xf32> to vector<16x1xf32>
      %cst_30 = arith.constant 3.200000e+01 : f32
      %65 = vector.broadcast %cst_30 : f32 to vector<16x1xf32>
      %66 = arith.divf %64, %65 : vector<16x1xf32>
      %67 = vector.broadcast %66 : vector<16x1xf32> to vector<16x32xf32>
      %68 = arith.subf %62, %67 : vector<16x32xf32>
      %69 = arith.mulf %68, %68 : vector<16x32xf32>
      %cst_31 = arith.constant dense<0.000000e+00> : vector<16xf32>
      %70 = vector.multi_reduction <add>, %69, %cst_31 [1] : vector<16x32xf32> to vector<16xf32>
      %71 = vector.shape_cast %70 : vector<16xf32> to vector<16x1xf32>
      %cst_32 = arith.constant 3.200000e+01 : f32
      %72 = vector.broadcast %cst_32 : f32 to vector<16x1xf32>
      %73 = arith.divf %71, %72 : vector<16x1xf32>
      %74 = vector.broadcast %66 : vector<16x1xf32> to vector<16x32xf32>
      %75 = arith.subf %62, %74 : vector<16x32xf32>
      %cst_33 = arith.constant 9.99999974E-6 : f32
      %76 = vector.broadcast %cst_33 : f32 to vector<16x1xf32>
      %77 = arith.addf %73, %76 : vector<16x1xf32>
      %78 = math.rsqrt %77 : vector<16x1xf32>
      %79 = vector.broadcast %78 : vector<16x1xf32> to vector<16x32xf32>
      %80 = arith.mulf %75, %79 : vector<16x32xf32>
      %c32 = arith.constant 32 : index
      %c0_34 = arith.constant 0 : index
      %81 = vector.load %arg7[%c32, %c0_34] : memref<512x128xbf16, #tpu.memory_space<vmem>>, vector<32x128xbf16>
      %c192 = arith.constant 192 : index
      %c0_35 = arith.constant 0 : index
      %82 = vector.load %arg7[%c192, %c0_35] : memref<512x128xbf16, #tpu.memory_space<vmem>>, vector<32x128xbf16>
      %83 = arith.extf %81 : vector<32x128xbf16> to vector<32x128xf32>
      %84 = vector.broadcast %3 : f32 to vector<32x128xf32>
      %85 = arith.mulf %84, %83 : vector<32x128xf32>
      %cst_36 = arith.constant 1.000000e+00 : f32
      %86 = arith.subf %cst_36, %3 : f32
      %87 = arith.extf %82 : vector<32x128xbf16> to vector<32x128xf32>
      %88 = vector.broadcast %86 : f32 to vector<32x128xf32>
      %89 = arith.mulf %88, %87 : vector<32x128xf32>
      %90 = arith.addf %85, %89 : vector<32x128xf32>
      %91 = arith.truncf %80 : vector<16x32xf32> to vector<16x32xbf16>
      %92 = arith.truncf %90 : vector<32x128xf32> to vector<32x128xbf16>
      %cst_37 = arith.constant dense<0.000000e+00> : vector<16x128xf32>
      %93 = tpu.matmul %91, %92, %cst_37 {dimension_numbers = #tpu.dot_dimension_numbers<[1], [0], [0], [1], [0, 0, 1, 1], [], []>} : vector<16x32xbf16>, vector<32x128xbf16>, vector<16x128xf32> -> vector<16x128xf32>
      %94 = vector.extract_strided_slice %0 {offsets = [1, 0], sizes = [1, 128], strides = [1, 1]} : vector<8x128xf32> to vector<1x128xf32>
      %95 = vector.extract_strided_slice %0 {offsets = [4, 0], sizes = [1, 128], strides = [1, 1]} : vector<8x128xf32> to vector<1x128xf32>
      %96 = vector.broadcast %3 : f32 to vector<1x128xf32>
      %97 = arith.mulf %96, %94 : vector<1x128xf32>
      %cst_38 = arith.constant 1.000000e+00 : f32
      %98 = arith.subf %cst_38, %3 : f32
      %99 = vector.broadcast %98 : f32 to vector<1x128xf32>
      %100 = arith.mulf %99, %95 : vector<1x128xf32>
      %101 = arith.addf %97, %100 : vector<1x128xf32>
      %102 = vector.broadcast %101 : vector<1x128xf32> to vector<16x128xf32>
      %103 = arith.addf %93, %102 : vector<16x128xf32>
      %cst_39 = arith.constant 0.000000e+00 : f32
      %104 = vector.broadcast %cst_39 : f32 to vector<16x128xf32>
      %105 = arith.maximumf %103, %104 : vector<16x128xf32>
      %c64 = arith.constant 64 : index
      %c0_40 = arith.constant 0 : index
      %106 = vector.load %arg7[%c64, %c0_40] : memref<512x128xbf16, #tpu.memory_space<vmem>>, vector<128x32xbf16>
      %c224 = arith.constant 224 : index
      %c0_41 = arith.constant 0 : index
      %107 = vector.load %arg7[%c224, %c0_41] : memref<512x128xbf16, #tpu.memory_space<vmem>>, vector<128x32xbf16>
      %108 = arith.extf %106 : vector<128x32xbf16> to vector<128x32xf32>
      %109 = vector.broadcast %3 : f32 to vector<128x32xf32>
      %110 = arith.mulf %109, %108 : vector<128x32xf32>
      %cst_42 = arith.constant 1.000000e+00 : f32
      %111 = arith.subf %cst_42, %3 : f32
      %112 = arith.extf %107 : vector<128x32xbf16> to vector<128x32xf32>
      %113 = vector.broadcast %111 : f32 to vector<128x32xf32>
      %114 = arith.mulf %113, %112 : vector<128x32xf32>
      %115 = arith.addf %110, %114 : vector<128x32xf32>
      %116 = arith.truncf %105 : vector<16x128xf32> to vector<16x128xbf16>
      %117 = arith.truncf %115 : vector<128x32xf32> to vector<128x32xbf16>
      %cst_43 = arith.constant dense<0.000000e+00> : vector<16x32xf32>
      %118 = tpu.matmul %116, %117, %cst_43 {dimension_numbers = #tpu.dot_dimension_numbers<[1], [0], [0], [1], [0, 0, 1, 1], [], []>} : vector<16x128xbf16>, vector<128x32xbf16>, vector<16x32xf32> -> vector<16x32xf32>
      %119 = vector.extract_strided_slice %0 {offsets = [2, 0], sizes = [1, 32], strides = [1, 1]} : vector<8x128xf32> to vector<1x32xf32>
      %120 = vector.extract_strided_slice %0 {offsets = [5, 0], sizes = [1, 32], strides = [1, 1]} : vector<8x128xf32> to vector<1x32xf32>
      %121 = vector.broadcast %3 : f32 to vector<1x32xf32>
      %122 = arith.mulf %121, %119 : vector<1x32xf32>
      %cst_44 = arith.constant 1.000000e+00 : f32
      %123 = arith.subf %cst_44, %3 : f32
      %124 = vector.broadcast %123 : f32 to vector<1x32xf32>
      %125 = arith.mulf %124, %120 : vector<1x32xf32>
      %126 = arith.addf %122, %125 : vector<1x32xf32>
      %127 = vector.broadcast %126 : vector<1x32xf32> to vector<16x32xf32>
      %128 = arith.addf %118, %127 : vector<16x32xf32>
      %c0_45 = arith.constant 0 : index
      %c0_46 = arith.constant 0 : index
      %129 = vector.load %arg10[%c0_45, %c0_46] : memref<16x32xf32, #tpu.memory_space<vmem>>, vector<16x32xf32>
      %130 = arith.addf %129, %128 : vector<16x32xf32>
      %c0_47 = arith.constant 0 : index
      %c0_48 = arith.constant 0 : index
      %131 = vector.load %arg10[%c0_47, %c0_48] : memref<16x32xf32, #tpu.memory_space<vmem>>, vector<16x32xf32>
      tpu.vector_store %arg10[%c0_47, %c0_48], %130 {strides = array<i32>} : memref<16x32xf32, #tpu.memory_space<vmem>>, vector<16x32xf32>,
      %c1_i32 = arith.constant 1 : i32
      %132 = arith.cmpi eq, %arg0, %c1_i32 : i32
      %133 = arith.extui %132 : i1 to i32
      %c0_i32_49 = arith.constant 0 : i32
      %134 = arith.cmpi ne, %133, %c0_i32_49 : i32
      scf.if %134 {
        %c0_50 = arith.constant 0 : index
        %c0_51 = arith.constant 0 : index
        %135 = vector.load %arg6[%c0_50, %c0_51] : memref<1x16xi32, #tpu.memory_space<vmem>>, vector<1x16xi32>
        %136 = tpu.iota {dimensions = array<i32: 0>} : vector<2x16xi32>
        %137 = vector.broadcast %135 : vector<1x16xi32> to vector<2x16xi32>
        %138 = arith.cmpi eq, %136, %137 : vector<2x16xi32>
        %139 = arith.extui %138 : vector<2x16xi1> to vector<2x16xi32>
        %140 = arith.sitofp %139 : vector<2x16xi32> to vector<2x16xf32>
        %cst_52 = arith.constant dense<0.000000e+00> : vector<2xf32>
        %141 = vector.multi_reduction <add>, %140, %cst_52 [1] : vector<2x16xf32> to vector<2xf32>
        %142 = vector.shape_cast %141 : vector<2xf32> to vector<2x1xf32>
        %143 = arith.truncf %140 : vector<2x16xf32> to vector<2x16xbf16>
        %144 = arith.truncf %130 : vector<16x32xf32> to vector<16x32xbf16>
        %cst_53 = arith.constant dense<0.000000e+00> : vector<2x32xf32>
        %145 = tpu.matmul %143, %144, %cst_53 {dimension_numbers = #tpu.dot_dimension_numbers<[1], [0], [0], [1], [0, 0, 1, 1], [], []>} : vector<2x16xbf16>, vector<16x32xbf16>, vector<2x32xf32> -> vector<2x32xf32>
        %cst_54 = arith.constant 1.000000e+00 : f32
        %146 = vector.broadcast %cst_54 : f32 to vector<2x1xf32>
        %147 = arith.maximumf %142, %146 : vector<2x1xf32>
        %148 = vector.broadcast %147 : vector<2x1xf32> to vector<2x32xf32>
        %149 = arith.divf %145, %148 : vector<2x32xf32>
        %c352 = arith.constant 352 : index
        %c0_55 = arith.constant 0 : index
        %150 = vector.load %arg7[%c352, %c0_55] : memref<512x128xbf16, #tpu.memory_space<vmem>>, vector<32x128xbf16>
        %151 = arith.truncf %149 : vector<2x32xf32> to vector<2x32xbf16>
        %cst_56 = arith.constant dense<0.000000e+00> : vector<2x128xf32>
        %152 = tpu.matmul %151, %150, %cst_56 {dimension_numbers = #tpu.dot_dimension_numbers<[1], [0], [0], [1], [0, 0, 1, 1], [], []>} : vector<2x32xbf16>, vector<32x128xbf16>, vector<2x128xf32> -> vector<2x128xf32>
        %153 = vector.extract_strided_slice %0 {offsets = [6, 0], sizes = [1, 128], strides = [1, 1]} : vector<8x128xf32> to vector<1x128xf32>
        %154 = vector.broadcast %153 : vector<1x128xf32> to vector<2x128xf32>
        %155 = arith.addf %152, %154 : vector<2x128xf32>
        %cst_57 = arith.constant 0.000000e+00 : f32
        %156 = vector.broadcast %cst_57 : f32 to vector<2x128xf32>
        %157 = arith.maximumf %155, %156 : vector<2x128xf32>
        %c384 = arith.constant 384 : index
        %c0_58 = arith.constant 0 : index
        %158 = vector.load %arg7[%c384, %c0_58] : memref<512x128xbf16, #tpu.memory_space<vmem>>, vector<128x1xbf16>
        %159 = arith.truncf %157 : vector<2x128xf32> to vector<2x128xbf16>
        %cst_59 = arith.constant dense<0.000000e+00> : vector<2x1xf32>
        %160 = tpu.matmul %159, %158, %cst_59 {dimension_numbers = #tpu.dot_dimension_numbers<[1], [0], [0], [1], [0, 0, 1, 1], [], []>} : vector<2x128xbf16>, vector<128x1xbf16>, vector<2x1xf32> -> vector<2x1xf32>
        %161 = vector.extract_strided_slice %0 {offsets = [7, 0], sizes = [1, 1], strides = [1, 1]} : vector<8x128xf32> to vector<1x1xf32>
        %162 = vector.broadcast %161 : vector<1x1xf32> to vector<2x1xf32>
        %163 = arith.addf %160, %162 : vector<2x1xf32>
        %c0_60 = arith.constant 0 : index
        %c0_61 = arith.constant 0 : index
        %164 = vector.load %arg9[%c0_60, %c0_61] : memref<2x1xf32, #tpu.memory_space<vmem>>, vector<2x1xf32>
        tpu.vector_store %arg9[%c0_60, %c0_61], %163 {strides = array<i32>} : memref<2x1xf32, #tpu.memory_space<vmem>>, vector<2x1xf32>,
      } else {
      }
    } else {
    }
    return
  }
  func.func @transform_0(%arg0: i32, %arg1: i32) -> (i32, i32) {
    %c0_i32 = arith.constant 0 : i32
    %c0_i32_0 = arith.constant 0 : i32
    %c0_i32_1 = arith.constant 0 : i32
    return %c0_i32, %c0_i32_0 : i32, i32
  }
  func.func @transform_1(%arg0: i32, %arg1: i32) -> (i32, i32) {
    %c0_i32 = arith.constant 0 : i32
    %c0_i32_0 = arith.constant 0 : i32
    return %arg1, %c0_i32 : i32, i32
  }
  func.func @transform_2(%arg0: i32, %arg1: i32) -> (i32, i32) {
    %c0_i32 = arith.constant 0 : i32
    %c0_i32_0 = arith.constant 0 : i32
    return %arg1, %c0_i32 : i32, i32
  }
  func.func @transform_3(%arg0: i32, %arg1: i32) -> (i32, i32) {
    %c0_i32 = arith.constant 0 : i32
    %c0_i32_0 = arith.constant 0 : i32
    return %c0_i32, %arg1 : i32, i32
  }
  func.func @transform_4(%arg0: i32, %arg1: i32) -> (i32, i32) {
    %c0_i32 = arith.constant 0 : i32
    %c0_i32_0 = arith.constant 0 : i32
    %c0_i32_1 = arith.constant 0 : i32
    return %c0_i32, %c0_i32_0 : i32, i32
  }
  func.func @transform_5(%arg0: i32, %arg1: i32) -> (i32, i32) {
    %c0_i32 = arith.constant 0 : i32
    %c0_i32_0 = arith.constant 0 : i32
    %c0_i32_1 = arith.constant 0 : i32
    return %c0_i32, %c0_i32_0 : i32, i32
  }
  func.func @transform_6(%arg0: i32, %arg1: i32) -> (i32, i32) {
    %c0_i32 = arith.constant 0 : i32
    %c0_i32_0 = arith.constant 0 : i32
    %c0_i32_1 = arith.constant 0 : i32
    return %c0_i32, %c0_i32_0 : i32, i32
  }
  func.func @transform_7(%arg0: i32, %arg1: i32) -> (i32, i32) {
    %c0_i32 = arith.constant 0 : i32
    %c0_i32_0 = arith.constant 0 : i32
    %c0_i32_1 = arith.constant 0 : i32
    return %c0_i32, %c0_i32_0 : i32, i32
  }
}

</mosaic_0001>

<llo_original>
// kernel: pmhci_forward.1
$region0: #{pmhci_forward.1}
  #allocation0 [shape = 'u32[]', space=smem, size = 0x4, offset = 0x4, fixed_abs, tag = 'smem constant byte address 0x4 - core index']
  #allocation1 [shape = 'u32[144,128]{1,0:T(1,128)}', space=vmem, size = 0x12000, scoped, tag = 'internal scratch']
  #allocation2 [shape = 'f32[16,32]{1,0:T(8,128)}', space=vmem, size = 0x2000, scoped, tag = 'scratch operand']
  #allocation3 [shape = 'f32[16,32]{1,0:T(8,128)}', space=vmem, size = 0x2000, scoped, tag = 'scratch operand']
  %s0 = inlined_call_operand.vmem [shape: f32[16,32], index: 0, kind: input, shape index: {}]
  %s1 = inlined_call_operand.vmem [shape: f32[128,16], index: 1, kind: input, shape index: {}]
  %s2 = inlined_call_operand.vmem [shape: s32[128,1], index: 2, kind: input, shape index: {}]
  %s3 = inlined_call_operand.vmem [shape: s32[1,128], index: 3, kind: input, shape index: {}]
  %s4 = inlined_call_operand.vmem [shape: s32[1,16], index: 4, kind: input, shape index: {}]
  %s5 = inlined_call_operand.vmem [shape: bf16[512,128], index: 5, kind: input, shape index: {}]
  %s6 = inlined_call_operand.vmem [shape: f32[8,128], index: 6, kind: input, shape index: {}]
  %s7 = inlined_call_operand.vmem [shape: f32[2,1], index: 7, kind: output, shape index: {}]
  %s8 = sld [smem:[#allocation0]]
  $region77: #{pmhci_forward.1} parent=0
    _
  %s10 = ssub.s32 1, %s8
  %s11 = scalar_select 0, %s10, %s8
  loop: start=0, step=1, limit=4
  $region2: #{pmhci_forward.1} parent=0 // loop_pre_header
    _
  $region3: #{pmhci_forward.1} parent=0 // loop_header
    %s13 = sphi 0, %s17
    %p14 = scmp.ge.s32.totalorder %s13, 4
    %s20 = sphi 0, %s32
    %s21 = sphi 0, %s28
    %s22 = sphi 0, %s20
    %s23 = sphi 0, %s21
    %s24 = sphi 0, %s22
    %s25 = sphi 0, %s23
    %s33 = sphi 0, %s33
    %s35 = sphi 0, %s33
    %s36 = sphi 0, %s35
    %s50 = sphi 0, %s36
    %s56 = sphi 0, %s58
    %s59 = sphi 0, %s56
    %s60 = sphi 0, %s59
    %s76 = sphi 0, %s60
    %s82 = sphi 0, %s84
    %s85 = sphi 0, %s82
    %s86 = sphi 0, %s85
    %s102 = sphi 0, %s86
    %s108 = sphi 0, %s110
    %s111 = sphi 0, %s108
    %s112 = sphi 0, %s111
    %s128 = sphi 0, %s112
    %s132 = sphi 0, %s132
    %s134 = sphi 0, %s132
    %s135 = sphi 0, %s134
    %s149 = sphi 0, %s135
    %s153 = sphi 0, %s153
    %s155 = sphi 0, %s153
    %s156 = sphi 0, %s155
    %s170 = sphi 0, %s156
    %s174 = sphi 0, %s174
    %s176 = sphi 0, %s174
    %s177 = sphi 0, %s176
    %s191 = sphi 0, %s177
    %s195 = sphi 0, %s195
    %s197 = sphi 0, %s195
    %s198 = sphi 0, %s197
    %s212 = sphi 0, %s198
  $region4: #{pmhci_forward.1} parent=0 // loop_header_branch
    %16 = sbr.rel (%p14) target = $region8
  $region5: #{pmhci_forward.1} parent=0 // loop_body
    %s18 = ssub.s32 %s13, 1
    %s19 = ssub.s32 %s13, 2
    %s26 = sadd.s32 1, %s21
    %p27 = scmp.ge.s32.totalorder %s26, 1
    %s28 = scalar_select %p27, 0, %s26
    %s29 = sadd.s32 1, %s20
    %s30 = scalar_select %p27, %s29, %s20
    %p31 = scmp.ge.s32.totalorder %s30, 2
    %s32 = scalar_select %p31, 0, %s30
    %s34 = sadd.s32 %s33, 1
    %p37 = scmp.eq.s32.totalorder %s13, 1
    %p38 = scmp.ne.s32.totalorder %s33, %s35
    %p39 = scmp.eq.s32.totalorder %s13, 0
    %p40 = por %p38, %p39
    %p41 = scmp.ne.s32.totalorder %s33, %s35
    %p42 = scmp.eq.s32.totalorder %s18, 1
    %p43 = por %p41, %p42
    %p44 = scmp.ne.s32.totalorder %s35, %s36
    %p45 = scmp.eq.s32.totalorder %s18, 0
    %p46 = por %p44, %p45
    %p47 = scmp.ne.s32.totalorder %s35, %s36
    %p48 = scmp.eq.s32.totalorder %s19, 1
    %p49 = por %p47, %p48
    %p51 = scmp.ne.s32.totalorder %s36, %s50
    %p52 = scmp.eq.s32.totalorder %s19, 0
    %p53 = por %p51, %p52
    %s54 = ssub.s32 %s21, %s28
    %p55 = scmp.eq.s32.totalorder %s54, 0
    %s57 = sadd.s32 %s56, 1
    %s58 = scalar_select %p55, %s56, %s57
    %p61 = pneg %p55
    %p62 = scmp.eq.s32.totalorder %s13, 1
    %p63 = por %p61, %p62
    %p64 = scmp.ne.s32.totalorder %s56, %s59
    %p65 = scmp.eq.s32.totalorder %s13, 0
    %p66 = por %p64, %p65
    %p67 = scmp.ne.s32.totalorder %s56, %s59
    %p68 = scmp.eq.s32.totalorder %s18, 1
    %p69 = por %p67, %p68
    %p70 = scmp.ne.s32.totalorder %s59, %s60
    %p71 = scmp.eq.s32.totalorder %s18, 0
    %p72 = por %p70, %p71
    %p73 = scmp.ne.s32.totalorder %s59, %s60
    %p74 = scmp.eq.s32.totalorder %s19, 1
    %p75 = por %p73, %p74
    %p77 = scmp.ne.s32.totalorder %s60, %s76
    %p78 = scmp.eq.s32.totalorder %s19, 0
    %p79 = por %p77, %p78
    %s80 = ssub.s32 %s21, %s28
    %p81 = scmp.eq.s32.totalorder %s80, 0
    %s83 = sadd.s32 %s82, 1
    %s84 = scalar_select %p81, %s82, %s83
    %p87 = pneg %p81
    %p88 = scmp.eq.s32.totalorder %s13, 1
    %p89 = por %p87, %p88
    %p90 = scmp.ne.s32.totalorder %s82, %s85
    %p91 = scmp.eq.s32.totalorder %s13, 0
    %p92 = por %p90, %p91
    %p93 = scmp.ne.s32.totalorder %s82, %s85
    %p94 = scmp.eq.s32.totalorder %s18, 1
    %p95 = por %p93, %p94
    %p96 = scmp.ne.s32.totalorder %s85, %s86
    %p97 = scmp.eq.s32.totalorder %s18, 0
    %p98 = por %p96, %p97
    %p99 = scmp.ne.s32.totalorder %s85, %s86
    %p100 = scmp.eq.s32.totalorder %s19, 1
    %p101 = por %p99, %p100
    %p103 = scmp.ne.s32.totalorder %s86, %s102
    %p104 = scmp.eq.s32.totalorder %s19, 0
    %p105 = por %p103, %p104
    %s106 = ssub.s32 %s21, %s28
    %p107 = scmp.eq.s32.totalorder %s106, 0
    %s109 = sadd.s32 %s108, 1
    %s110 = scalar_select %p107, %s108, %s109
    %p113 = pneg %p107
    %p114 = scmp.eq.s32.totalorder %s13, 1
    %p115 = por %p113, %p114
    %p116 = scmp.ne.s32.totalorder %s108, %s111
    %p117 = scmp.eq.s32.totalorder %s13, 0
    %p118 = por %p116, %p117
    %p119 = scmp.ne.s32.totalorder %s108, %s111
    %p120 = scmp.eq.s32.totalorder %s18, 1
    %p121 = por %p119, %p120
    %p122 = scmp.ne.s32.totalorder %s111, %s112
    %p123 = scmp.eq.s32.totalorder %s18, 0
    %p124 = por %p122, %p123
    %p125 = scmp.ne.s32.totalorder %s111, %s112
    %p126 = scmp.eq.s32.totalorder %s19, 1
    %p127 = por %p125, %p126
    %p129 = scmp.ne.s32.totalorder %s112, %s128
    %p130 = scmp.eq.s32.totalorder %s19, 0
    %p131 = por %p129, %p130
    %s133 = sadd.s32 %s132, 1
    %p136 = scmp.eq.s32.totalorder %s13, 1
    %p137 = scmp.ne.s32.totalorder %s132, %s134
    %p138 = scmp.eq.s32.totalorder %s13, 0
    %p139 = por %p137, %p138
    %p140 = scmp.ne.s32.totalorder %s132, %s134
    %p141 = scmp.eq.s32.totalorder %s18, 1
    %p142 = por %p140, %p141
    %p143 = scmp.ne.s32.totalorder %s134, %s135
    %p144 = scmp.eq.s32.totalorder %s18, 0
    %p145 = por %p143, %p144
    %p146 = scmp.ne.s32.totalorder %s134, %s135
    %p147 = scmp.eq.s32.totalorder %s19, 1
    %p148 = por %p146, %p147
    %p150 = scmp.ne.s32.totalorder %s135, %s149
    %p151 = scmp.eq.s32.totalorder %s19, 0
    %p152 = por %p150, %p151
    %s154 = sadd.s32 %s153, 1
    %p157 = scmp.eq.s32.totalorder %s13, 1
    %p158 = scmp.ne.s32.totalorder %s153, %s155
    %p159 = scmp.eq.s32.totalorder %s13, 0
    %p160 = por %p158, %p159
    %p161 = scmp.ne.s32.totalorder %s153, %s155
    %p162 = scmp.eq.s32.totalorder %s18, 1
    %p163 = por %p161, %p162
    %p164 = scmp.ne.s32.totalorder %s155, %s156
    %p165 = scmp.eq.s32.totalorder %s18, 0
    %p166 = por %p164, %p165
    %p167 = scmp.ne.s32.totalorder %s155, %s156
    %p168 = scmp.eq.s32.totalorder %s19, 1
    %p169 = por %p167, %p168
    %p171 = scmp.ne.s32.totalorder %s156, %s170
    %p172 = scmp.eq.s32.totalorder %s19, 0
    %p173 = por %p171, %p172
    %s175 = sadd.s32 %s174, 1
    %p178 = scmp.eq.s32.totalorder %s13, 1
    %p179 = scmp.ne.s32.totalorder %s174, %s176
    %p180 = scmp.eq.s32.totalorder %s13, 0
    %p181 = por %p179, %p180
    %p182 = scmp.ne.s32.totalorder %s174, %s176
    %p183 = scmp.eq.s32.totalorder %s18, 1
    %p184 = por %p182, %p183
    %p185 = scmp.ne.s32.totalorder %s176, %s177
    %p186 = scmp.eq.s32.totalorder %s18, 0
    %p187 = por %p185, %p186
    %p188 = scmp.ne.s32.totalorder %s176, %s177
    %p189 = scmp.eq.s32.totalorder %s19, 1
    %p190 = por %p188, %p189
    %p192 = scmp.ne.s32.totalorder %s177, %s191
    %p193 = scmp.eq.s32.totalorder %s19, 0
    %p194 = por %p192, %p193
    %s196 = sadd.s32 %s195, 1
    %p199 = scmp.eq.s32.totalorder %s13, 1
    %p200 = scmp.ne.s32.totalorder %s195, %s197
    %p201 = scmp.eq.s32.totalorder %s13, 0
    %p202 = por %p200, %p201
    %p203 = scmp.ne.s32.totalorder %s195, %s197
    %p204 = scmp.eq.s32.totalorder %s18, 1
    %p205 = por %p203, %p204
    %p206 = scmp.ne.s32.totalorder %s197, %s198
    %p207 = scmp.eq.s32.totalorder %s18, 0
    %p208 = por %p206, %p207
    %p209 = scmp.ne.s32.totalorder %s197, %s198
    %p210 = scmp.eq.s32.totalorder %s19, 1
    %p211 = por %p209, %p210
    %p213 = scmp.ne.s32.totalorder %s198, %s212
    %p214 = scmp.eq.s32.totalorder %s19, 0
    %p215 = por %p213, %p214
    %p216 = scmp.le.s32.totalorder 1, %s13
    %p217 = scmp.lt.s32.totalorder %s13, 3
    %p218 = pnand %p216, %p217
    %p219 = pneg %p218
    // Predicated region
    $region9: #{pmhci_forward.1} parent=5 // pred_check
      _
    $region10: #{pmhci_forward.1} parent=5 // pred_check_branch
      %221 = sbr.rel (%p218) target = $region12
    $region11: #{pmhci_forward.1} parent=5 // pred_region
      %s222 = ssub.s32 %s13, 1
      // Predicated region
      $region13: #{pmhci_forward.1} parent=11 // pred_check
        %p223 = pneg %p46
      $region14: #{pmhci_forward.1} parent=11 // pred_check_branch
        %225 = sbr.rel (%p223) target = $region16
      $region15: #{pmhci_forward.1} parent=11 // pred_region
        _
      $region16: #{pmhci_forward.1} parent=11 // pred_fallthru
        _
      // Predicated region
      $region17: #{pmhci_forward.1} parent=11 // pred_check
        %p226 = pneg %p72
      $region18: #{pmhci_forward.1} parent=11 // pred_check_branch
        %228 = sbr.rel (%p226) target = $region20
      $region19: #{pmhci_forward.1} parent=11 // pred_region
        %s229 = smul.u32 16, %s23
        %p230 = scmp.lt.s32.totalorder %s229, 15
        %s231 = scalar_select %p230, %s229, 15
        %s232 = smul.addr %s231, 8
        %s233 = scalar_lea.vmem %s1, %s232
        %s234 = smul.u32 16, %s23
      $region20: #{pmhci_forward.1} parent=11 // pred_fallthru
        _
      // Predicated region
      $region21: #{pmhci_forward.1} parent=11 // pred_check
        %p235 = pneg %p98
      $region22: #{pmhci_forward.1} parent=11 // pred_check_branch
        %237 = sbr.rel (%p235) target = $region24
      $region23: #{pmhci_forward.1} parent=11 // pred_region
        %s238 = smul.u32 16, %s23
        %p239 = scmp.lt.s32.totalorder %s238, 15
        %s240 = scalar_select %p239, %s238, 15
        %s241 = smul.addr %s240, 8
        %s242 = scalar_lea.vmem %s2, %s241
        %s243 = smul.u32 16, %s23
      $region24: #{pmhci_forward.1} parent=11 // pred_fallthru
        _
      // Predicated region
      $region25: #{pmhci_forward.1} parent=11 // pred_check
        %p244 = pneg %p124
      $region26: #{pmhci_forward.1} parent=11 // pred_check_branch
        %246 = sbr.rel (%p244) target = $region28
      $region27: #{pmhci_forward.1} parent=11 // pred_region
        %p247 = scmp.lt.s32.totalorder %s23, 0
        %s248 = scalar_select %p247, %s23, 0
        %s249 = scalar_lea.vmem %s3, %s248
      $region28: #{pmhci_forward.1} parent=11 // pred_fallthru
        _
      // Predicated region
      $region29: #{pmhci_forward.1} parent=11 // pred_check
        %p250 = pneg %p145
      $region30: #{pmhci_forward.1} parent=11 // pred_check_branch
        %252 = sbr.rel (%p250) target = $region32
      $region31: #{pmhci_forward.1} parent=11 // pred_region
        _
      $region32: #{pmhci_forward.1} parent=11 // pred_fallthru
        _
      // Predicated region
      $region33: #{pmhci_forward.1} parent=11 // pred_check
        %p253 = pneg %p166
      $region34: #{pmhci_forward.1} parent=11 // pred_check_branch
        %255 = sbr.rel (%p253) target = $region36
      $region35: #{pmhci_forward.1} parent=11 // pred_region
        _
      $region36: #{pmhci_forward.1} parent=11 // pred_fallthru
        _
      // Predicated region
      $region37: #{pmhci_forward.1} parent=11 // pred_check
        %p256 = pneg %p187
      $region38: #{pmhci_forward.1} parent=11 // pred_check_branch
        %258 = sbr.rel (%p256) target = $region40
      $region39: #{pmhci_forward.1} parent=11 // pred_region
        _
      $region40: #{pmhci_forward.1} parent=11 // pred_fallthru
        _
    $region12: #{pmhci_forward.1} parent=5 // pred_fallthru
      _
    %p259 = scmp.lt.s32.totalorder %s13, 2
    // Predicated region
    $region41: #{pmhci_forward.1} parent=5 // pred_check
      %p260 = pneg %p259
    $region42: #{pmhci_forward.1} parent=5 // pred_check_branch
      %262 = sbr.rel (%p260) target = $region44
    $region43: #{pmhci_forward.1} parent=5 // pred_region
      _
    $region44: #{pmhci_forward.1} parent=5 // pred_fallthru
      _
    %p263 = scmp.le.s32.totalorder 1, %s13
    %p264 = scmp.lt.s32.totalorder %s13, 3
    %p265 = pnand %p263, %p264
    %p266 = pneg %p265
    // Predicated region
    $region45: #{pmhci_forward.1} parent=5 // pred_check
      _
    $region46: #{pmhci_forward.1} parent=5 // pred_check_branch
      %268 = sbr.rel (%p265) target = $region48
    $region47: #{pmhci_forward.1} parent=5 // pred_region
      %s269 = ssub.s32 %s13, 1
      %p270 = pneg %p46
      %p271 = pneg %p43
      %s272 = smul.u32 16, %s23
      %p273 = scmp.lt.s32.totalorder %s272, 15
      %s274 = scalar_select %p273, %s272, 15
      %s275 = smul.addr %s274, 8
      %s276 = scalar_lea.vmem %s1, %s275
      %p277 = pneg %p72
      %p278 = pneg %p69
      %s279 = smul.u32 16, %s23
      %p280 = scmp.lt.s32.totalorder %s279, 15
      %s281 = scalar_select %p280, %s279, 15
      %s282 = smul.addr %s281, 8
      %s283 = scalar_lea.vmem %s2, %s282
      %p284 = pneg %p98
      %p285 = pneg %p95
      %p286 = scmp.lt.s32.totalorder %s23, 0
      %s287 = scalar_select %p286, %s23, 0
      %s288 = scalar_lea.vmem %s3, %s287
      %p289 = pneg %p124
      %p290 = pneg %p121
      %p291 = pneg %p145
      %p292 = pneg %p142
      %p293 = pneg %p166
      %p294 = pneg %p163
      %p295 = pneg %p187
      %p296 = pneg %p184
      %p297 = pneg %p208
      %p298 = pneg %p205
      %s299 = smul.u32 16, %s23
      %p300 = scmp.lt.s32.totalorder %s299, 15
      %s301 = scalar_select %p300, %s299, 15
      %s302 = smul.addr %s301, 8
      %s303 = scalar_lea.vmem %s1, %s302
      %s304 = smul.u32 16, %s23
      %s305 = smul.u32 16, %s23
      %p306 = scmp.lt.s32.totalorder %s305, 15
      %s307 = scalar_select %p306, %s305, 15
      %s308 = smul.addr %s307, 8
      %s309 = scalar_lea.vmem %s2, %s308
      %s310 = smul.u32 16, %s23
      %p311 = scmp.lt.s32.totalorder %s23, 0
      %s312 = scalar_select %p311, %s23, 0
      %s313 = scalar_lea.vmem %s3, %s312
      %v315 = vld [vmem:[%s6] sm:$0xff]
      %p316 = scmp.eq.s32.totalorder %s22, 0
      %s317 = scalar_select %p316, 1, 0
      %s318 = scvt.s32.f32 %s317
      %p319 = scmp.eq.s32.totalorder %s23, 0
      %p320 = pnand %p316, %p319
      %p321 = pneg %p320
      // Predicated region
      $region49: #{pmhci_forward.1} parent=47 // pred_check
        _
      $region50: #{pmhci_forward.1} parent=47 // pred_check_branch
        %323 = sbr.rel (%p320) target = $region52
      $region51: #{pmhci_forward.1} parent=47 // pred_region
        %v324 = vld [vmem:[%s0] sm:$0xff]
        %v325 = vld [vmem:[%s0 + $0x8] sm:$0xff]
        %vm326 = vcmask 261120
        %327 = vst.msk [vmem:[#allocation2] sm:$0xff] %vm326, %v324
        %328 = vst.msk [vmem:[#allocation2 + $0x8] sm:$0xff] %vm326, %v325
        %vm329 = vcmask 1024
        %330 = vst.msk [vmem:[%s7] sm:$0x3] %vm329, 0.0
      $region52: #{pmhci_forward.1} parent=47 // pred_fallthru
        _
      // Predicated region
      $region53: #{pmhci_forward.1} parent=47 // pred_check
        %p331 = pneg %p319
      $region54: #{pmhci_forward.1} parent=47 // pred_check_branch
        %333 = sbr.rel (%p331) target = $region56
      $region55: #{pmhci_forward.1} parent=47 // pred_region
        %vm334 = vcmask 261120
        %335 = vst.msk [vmem:[#allocation3] sm:$0xff] %vm334, 0.0
        %336 = vst.msk [vmem:[#allocation3 + $0x8] sm:$0xff] %vm334, 0.0
      $region56: #{pmhci_forward.1} parent=47 // pred_fallthru
        _
      %v337 = vld [vmem:[%s5] sm:$0xf]
      %v338 = vld [vmem:[%s5 + $0x4] sm:$0xf]
      %v339 = vld [vmem:[%s5 + $0x8] sm:$0xf]
      %v340 = vld [vmem:[%s5 + $0xc] sm:$0xf]
      %v341 = vunpack.c.l.bf16 %v337
      %v342 = vunpack.c.l.bf16 %v338
      %v343 = vstv %s318
      %v344 = vmul.f32 %v343, %v341
      %v345 = vmul.f32 %v343, %v342
      %s346 = ssub.f32 1.0, %s318
      %v347 = vunpack.c.l.bf16 %v339
      %v348 = vunpack.c.l.bf16 %v340
      %v349 = vstv %s346
      %v350 = vmul.f32 %v349, %v347
      %v351 = vmul.f32 %v349, %v348
      %v352 = vadd.f32 %v344, %v350
      %v353 = vadd.f32 %v345, %v351
      %v354 = vld [vmem:[%s303] sm:$0xff]
      %v355 = vld [vmem:[%s303 + $0x8] sm:$0xff]
      %v356 = vld [vmem:[%s303 + $0x10] sm:$0xff]
      %v357 = vld [vmem:[%s303 + $0x18] sm:$0xff]
      %v358 = vld [vmem:[%s303 + $0x20] sm:$0xff]
      %v359 = vld [vmem:[%s303 + $0x28] sm:$0xff]
      %v360 = vld [vmem:[%s303 + $0x30] sm:$0xff]
      %v361 = vld [vmem:[%s303 + $0x38] sm:$0xff]
      %v362 = vld [vmem:[%s303 + $0x40] sm:$0xff]
      %v363 = vld [vmem:[%s303 + $0x48] sm:$0xff]
      %v364 = vld [vmem:[%s303 + $0x50] sm:$0xff]
      %v365 = vld [vmem:[%s303 + $0x58] sm:$0xff]
      %v366 = vld [vmem:[%s303 + $0x60] sm:$0xff]
      %v367 = vld [vmem:[%s303 + $0x68] sm:$0xff]
      %v368 = vld [vmem:[%s303 + $0x70] sm:$0xff]
      %v369 = vld [vmem:[%s303 + $0x78] sm:$0xff]
      %v370 = vpack.c.bf16 %v355, %v354
      %v371 = vpack.c.bf16 %v357, %v356
      %v372 = vpack.c.bf16 %v359, %v358
      %v373 = vpack.c.bf16 %v361, %v360
      %v374 = vpack.c.bf16 %v363, %v362
      %v375 = vpack.c.bf16 %v365, %v364
      %v376 = vpack.c.bf16 %v367, %v366
      %v377 = vpack.c.bf16 %v369, %v368
      %v378 = vpack.c.bf16 %v353, %v352
      %vm379 = vcmask 130048
      %v381 = vsel %vm379, %v370, 0
      %v384 = vsel %vm379, %v371, 0
      %v387 = vsel %vm379, %v372, 0
      %v390 = vsel %vm379, %v373, 0
      %v393 = vsel %vm379, %v374, 0
      %v396 = vsel %vm379, %v375, 0
      %v399 = vsel %vm379, %v376, 0
      %v402 = vsel %vm379, %v377, 0
      %404 = vmatprep.subr.bf16.mxu0 0
      %405 = vmatpush1.bf16.msra.mxu0 %v378
      %406 = vmatprep.subr.bf16.mxu0 0
      %407 = vmatpush1.bf16.msra.mxu0 0
      %408 = vmatprep.subr.bf16.mxu0 0
      %409 = vmatpush1.bf16.msra.mxu0 0
      %410 = vmatprep.subr.bf16.mxu0 0
      %411 = vmatpush1.bf16.msra.mxu0 0
      %412 = vmatprep.subr.bf16.mxu0 0
      %413 = vmatpush1.bf16.msra.mxu0 0
      %414 = vmatprep.subr.bf16.mxu0 0
      %415 = vmatpush1.bf16.msra.mxu0 0
      %416 = vmatprep.subr.bf16.mxu0 0
      %417 = vmatpush1.bf16.msra.mxu0 0
      %418 = vmatprep.subr.bf16.mxu0 0
      %419 = vmatpush1.bf16.msra.mxu0 0
      %420 = vmatprep.subr.bf16.mxu0 0
      %421 = vmatpush1.bf16.msra.mxu0 0
      %422 = vmatprep.subr.bf16.mxu0 0
      %423 = vmatpush1.bf16.msra.mxu0 0
      %424 = vmatprep.subr.bf16.mxu0 0
      %425 = vmatpush1.bf16.msra.mxu0 0
      %426 = vmatprep.subr.bf16.mxu0 0
      %427 = vmatpush1.bf16.msra.mxu0 0
      %428 = vmatprep.subr.bf16.mxu0 0
      %429 = vmatpush1.bf16.msra.mxu0 0
      %430 = vmatprep.subr.bf16.mxu0 0
      %431 = vmatpush1.bf16.msra.mxu0 0
      %432 = vmatprep.subr.bf16.mxu0 0
      %433 = vmatpush1.bf16.msra.mxu0 0
      %434 = vmatprep.subr.bf16.mxu0 0
      %435 = vmatpush1.bf16.msra.mxu0 0
      %436 = vmatprep.mubr.bf16.mxu0 0
      %437 = vmatmul.mubr.bf16.gmra.mrb[0].mxu0 %v381
      %v438 = vpop.f32.mrb[0].mxu0
      %v439 = vadd.f32 0.0, %v438
      %v440 = vpop.f32.mrb[0].mxu0
      %v441 = vpop.f32.mrb[0].mxu0
      %v442 = vadd.f32 0.0, %v441
      %v443 = vpop.f32.mrb[0].mxu0
      %444 = vmatprep.mubr.bf16.mxu0 0
      %445 = vmatmul.mubr.bf16.gmra.mrb[0].mxu0 %v384
      %v446 = vpop.f32.mrb[0].mxu0
      %v447 = vadd.f32 0.0, %v446
      %v448 = vpop.f32.mrb[0].mxu0
      %v449 = vpop.f32.mrb[0].mxu0
      %v450 = vadd.f32 0.0, %v449
      %v451 = vpop.f32.mrb[0].mxu0
      %452 = vmatprep.mubr.bf16.mxu0 0
      %453 = vmatmul.mubr.bf16.gmra.mrb[0].mxu0 %v387
      %v454 = vpop.f32.mrb[0].mxu0
      %v455 = vadd.f32 0.0, %v454
      %v456 = vpop.f32.mrb[0].mxu0
      %v457 = vpop.f32.mrb[0].mxu0
      %v458 = vadd.f32 0.0, %v457
      %v459 = vpop.f32.mrb[0].mxu0
      %460 = vmatprep.mubr.bf16.mxu0 0
      %461 = vmatmul.mubr.bf16.gmra.mrb[0].mxu0 %v390
      %v462 = vpop.f32.mrb[0].mxu0
      %v463 = vadd.f32 0.0, %v462
      %v464 = vpop.f32.mrb[0].mxu0
      %v465 = vpop.f32.mrb[0].mxu0
      %v466 = vadd.f32 0.0, %v465
      %v467 = vpop.f32.mrb[0].mxu0
      %468 = vmatprep.mubr.bf16.mxu0 0
      %469 = vmatmul.mubr.bf16.gmra.mrb[0].mxu0 %v393
      %v470 = vpop.f32.mrb[0].mxu0
      %v471 = vadd.f32 0.0, %v470
      %v472 = vpop.f32.mrb[0].mxu0
      %v473 = vpop.f32.mrb[0].mxu0
      %v474 = vadd.f32 0.0, %v473
      %v475 = vpop.f32.mrb[0].mxu0
      %476 = vmatprep.mubr.bf16.mxu0 0
      %477 = vmatmul.mubr.bf16.gmra.mrb[0].mxu0 %v396
      %v478 = vpop.f32.mrb[0].mxu0
      %v479 = vadd.f32 0.0, %v478
      %v480 = vpop.f32.mrb[0].mxu0
      %v481 = vpop.f32.mrb[0].mxu0
      %v482 = vadd.f32 0.0, %v481
      %v483 = vpop.f32.mrb[0].mxu0
      %484 = vmatprep.mubr.bf16.mxu0 0
      %485 = vmatmul.mubr.bf16.gmra.mrb[0].mxu0 %v399
      %v486 = vpop.f32.mrb[0].mxu0
      %v487 = vadd.f32 0.0, %v486
      %v488 = vpop.f32.mrb[0].mxu0
      %v489 = vpop.f32.mrb[0].mxu0
      %v490 = vadd.f32 0.0, %v489
      %v491 = vpop.f32.mrb[0].mxu0
      %492 = vmatprep.mubr.bf16.mxu0 0
      %493 = vmatmul.mubr.bf16.gmra.mrb[0].mxu0 %v402
      %v494 = vpop.f32.mrb[0].mxu0
      %v495 = vadd.f32 0.0, %v494
      %v496 = vpop.f32.mrb[0].mxu0
      %v497 = vpop.f32.mrb[0].mxu0
      %v498 = vadd.f32 0.0, %v497
      %v499 = vpop.f32.mrb[0].mxu0
      %500 = vdwg.mxu0
      %v501 = vld [vmem:[%s309] sm:$0xff]
      %v502 = vld [vmem:[%s309 + $0x8] sm:$0xff]
      %v503 = vld [vmem:[%s309 + $0x10] sm:$0xff]
      %v504 = vld [vmem:[%s309 + $0x18] sm:$0xff]
      %v505 = vld [vmem:[%s309 + $0x20] sm:$0xff]
      %v506 = vld [vmem:[%s309 + $0x28] sm:$0xff]
      %v507 = vld [vmem:[%s309 + $0x30] sm:$0xff]
      %v508 = vld [vmem:[%s309 + $0x38] sm:$0xff]
      %v509 = vld [vmem:[%s309 + $0x40] sm:$0xff]
      %v510 = vld [vmem:[%s309 + $0x48] sm:$0xff]
      %v511 = vld [vmem:[%s309 + $0x50] sm:$0xff]
      %v512 = vld [vmem:[%s309 + $0x58] sm:$0xff]
      %v513 = vld [vmem:[%s309 + $0x60] sm:$0xff]
      %v514 = vld [vmem:[%s309 + $0x68] sm:$0xff]
      %v515 = vld [vmem:[%s309 + $0x70] sm:$0xff]
      %v516 = vld [vmem:[%s309 + $0x78] sm:$0xff]
      %v517 = vld [vmem:[%s313] sm:$0x1]
      %v518 = vlaneseq
      %v519 = vand.u32 %v518, 127
      %520 = vset.pattern.permute.xlu0 0
      %521 = vperm.xlu0 %520, %v501
      %v522 = vpop.permute.xlu0 %521
      %523 = vset.pattern.permute.xlu0 0
      %524 = vperm.xlu0 %523, %v502
      %v525 = vpop.permute.xlu0 %524
      %526 = vset.pattern.permute.xlu0 0
      %527 = vperm.xlu0 %526, %v503
      %v528 = vpop.permute.xlu0 %527
      %529 = vset.pattern.permute.xlu0 0
      %530 = vperm.xlu0 %529, %v504
      %v531 = vpop.permute.xlu0 %530
      %532 = vset.pattern.permute.xlu0 0
      %533 = vperm.xlu0 %532, %v505
      %v534 = vpop.permute.xlu0 %533
      %535 = vset.pattern.permute.xlu0 0
      %536 = vperm.xlu0 %535, %v506
      %v537 = vpop.permute.xlu0 %536
      %538 = vset.pattern.permute.xlu0 0
      %539 = vperm.xlu0 %538, %v507
      %v540 = vpop.permute.xlu0 %539
      %541 = vset.pattern.permute.xlu0 0
      %542 = vperm.xlu0 %541, %v508
      %v543 = vpop.permute.xlu0 %542
      %544 = vset.pattern.permute.xlu0 0
      %545 = vperm.xlu0 %544, %v509
      %v546 = vpop.permute.xlu0 %545
      %547 = vset.pattern.permute.xlu0 0
      %548 = vperm.xlu0 %547, %v510
      %v549 = vpop.permute.xlu0 %548
      %550 = vset.pattern.permute.xlu0 0
      %551 = vperm.xlu0 %550, %v511
      %v552 = vpop.permute.xlu0 %551
      %553 = vset.pattern.permute.xlu0 0
      %554 = vperm.xlu0 %553, %v512
      %v555 = vpop.permute.xlu0 %554
      %556 = vset.pattern.permute.xlu0 0
      %557 = vperm.xlu0 %556, %v513
      %v558 = vpop.permute.xlu0 %557
      %559 = vset.pattern.permute.xlu0 0
      %560 = vperm.xlu0 %559, %v514
      %v561 = vpop.permute.xlu0 %560
      %562 = vset.pattern.permute.xlu0 0
      %563 = vperm.xlu0 %562, %v515
      %v564 = vpop.permute.xlu0 %563
      %565 = vset.pattern.permute.xlu0 0
      %566 = vperm.xlu0 %565, %v516
      %v567 = vpop.permute.xlu0 %566
      %vm568 = vcmp.eq.s32.totalorder %v519, %v522
      %vm569 = vcmp.eq.s32.totalorder %v519, %v525
      %vm570 = vcmp.eq.s32.totalorder %v519, %v528
      %vm571 = vcmp.eq.s32.totalorder %v519, %v531
      %vm572 = vcmp.eq.s32.totalorder %v519, %v534
      %vm573 = vcmp.eq.s32.totalorder %v519, %v537
      %vm574 = vcmp.eq.s32.totalorder %v519, %v540
      %vm575 = vcmp.eq.s32.totalorder %v519, %v543
      %vm576 = vcmp.eq.s32.totalorder %v519, %v546
      %vm577 = vcmp.eq.s32.totalorder %v519, %v549
      %vm578 = vcmp.eq.s32.totalorder %v519, %v552
      %vm579 = vcmp.eq.s32.totalorder %v519, %v555
      %vm580 = vcmp.eq.s32.totalorder %v519, %v558
      %vm581 = vcmp.eq.s32.totalorder %v519, %v561
      %vm582 = vcmp.eq.s32.totalorder %v519, %v564
      %vm583 = vcmp.eq.s32.totalorder %v519, %v567
      %v584 = vld [vmem:[#allocation2] sm:$0xff]
      %v585 = vld [vmem:[#allocation2 + $0x8] sm:$0xff]
      %v586 = vsel %vm568, 1, 0
      %v587 = vsel %vm569, 1, 0
      %v588 = vsel %vm570, 1, 0
      %v589 = vsel %vm571, 1, 0
      %v590 = vsel %vm572, 1, 0
      %v591 = vsel %vm573, 1, 0
      %v592 = vsel %vm574, 1, 0
      %v593 = vsel %vm575, 1, 0
      %v594 = vsel %vm576, 1, 0
      %v595 = vsel %vm577, 1, 0
      %v596 = vsel %vm578, 1, 0
      %v597 = vsel %vm579, 1, 0
      %v598 = vsel %vm580, 1, 0
      %v599 = vsel %vm581, 1, 0
      %v600 = vsel %vm582, 1, 0
      %v601 = vsel %vm583, 1, 0
      %v602 = vcvt.s32.f32 %v586
      %v603 = vcvt.s32.f32 %v587
      %v604 = vcvt.s32.f32 %v588
      %v605 = vcvt.s32.f32 %v589
      %v606 = vcvt.s32.f32 %v590
      %v607 = vcvt.s32.f32 %v591
      %v608 = vcvt.s32.f32 %v592
      %v609 = vcvt.s32.f32 %v593
      %v610 = vcvt.s32.f32 %v594
      %v611 = vcvt.s32.f32 %v595
      %v612 = vcvt.s32.f32 %v596
      %v613 = vcvt.s32.f32 %v597
      %v614 = vcvt.s32.f32 %v598
      %v615 = vcvt.s32.f32 %v599
      %v616 = vcvt.s32.f32 %v600
      %v617 = vcvt.s32.f32 %v601
      %v618 = vpack.c.bf16 %v603, %v602
      %v619 = vpack.c.bf16 %v605, %v604
      %v620 = vpack.c.bf16 %v607, %v606
      %v621 = vpack.c.bf16 %v609, %v608
      %v622 = vpack.c.bf16 %v611, %v610
      %v623 = vpack.c.bf16 %v613, %v612
      %v624 = vpack.c.bf16 %v615, %v614
      %v625 = vpack.c.bf16 %v617, %v616
      %v626 = vpack.c.bf16 %v585, %v584
      %v628 = vsel %vm379, %v618, 0
      %v631 = vsel %vm379, %v619, 0
      %v634 = vsel %vm379, %v620, 0
      %v637 = vsel %vm379, %v621, 0
      %v640 = vsel %vm379, %v622, 0
      %v643 = vsel %vm379, %v623, 0
      %v646 = vsel %vm379, %v624, 0
      %v649 = vsel %vm379, %v625, 0
      %651 = vmatprep.subr.bf16.mxu0 0
      %652 = vmatpush1.bf16.msra.mxu0 %v626
      %653 = vmatprep.subr.bf16.mxu0 0
      %654 = vmatpush1.bf16.msra.mxu0 0
      %655 = vmatprep.subr.bf16.mxu0 0
      %656 = vmatpush1.bf16.msra.mxu0 0
      %657 = vmatprep.subr.bf16.mxu0 0
      %658 = vmatpush1.bf16.msra.mxu0 0
      %659 = vmatprep.subr.bf16.mxu0 0
      %660 = vmatpush1.bf16.msra.mxu0 0
      %661 = vmatprep.subr.bf16.mxu0 0
      %662 = vmatpush1.bf16.msra.mxu0 0
      %663 = vmatprep.subr.bf16.mxu0 0
      %664 = vmatpush1.bf16.msra.mxu0 0
      %665 = vmatprep.subr.bf16.mxu0 0
      %666 = vmatpush1.bf16.msra.mxu0 0
      %667 = vmatprep.subr.bf16.mxu0 0
      %668 = vmatpush1.bf16.msra.mxu0 0
      %669 = vmatprep.subr.bf16.mxu0 0
      %670 = vmatpush1.bf16.msra.mxu0 0
      %671 = vmatprep.subr.bf16.mxu0 0
      %672 = vmatpush1.bf16.msra.mxu0 0
      %673 = vmatprep.subr.bf16.mxu0 0
      %674 = vmatpush1.bf16.msra.mxu0 0
      %675 = vmatprep.subr.bf16.mxu0 0
      %676 = vmatpush1.bf16.msra.mxu0 0
      %677 = vmatprep.subr.bf16.mxu0 0
      %678 = vmatpush1.bf16.msra.mxu0 0
      %679 = vmatprep.subr.bf16.mxu0 0
      %680 = vmatpush1.bf16.msra.mxu0 0
      %681 = vmatprep.subr.bf16.mxu0 0
      %682 = vmatpush1.bf16.msra.mxu0 0
      %683 = vmatprep.mubr.bf16.mxu0 0
      %684 = vmatmul.mubr.bf16.gmra.mrb[0].mxu0 %v628
      %v685 = vpop.f32.mrb[0].mxu0
      %v686 = vadd.f32 0.0, %v685
      %v687 = vpop.f32.mrb[0].mxu0
      %v688 = vpop.f32.mrb[0].mxu0
      %v689 = vadd.f32 0.0, %v688
      %v690 = vpop.f32.mrb[0].mxu0
      %691 = vmatprep.mubr.bf16.mxu0 0
      %692 = vmatmul.mubr.bf16.gmra.mrb[0].mxu0 %v631
      %v693 = vpop.f32.mrb[0].mxu0
      %v694 = vadd.f32 0.0, %v693
      %v695 = vpop.f32.mrb[0].mxu0
      %v696 = vpop.f32.mrb[0].mxu0
      %v697 = vadd.f32 0.0, %v696
      %v698 = vpop.f32.mrb[0].mxu0
      %699 = vmatprep.mubr.bf16.mxu0 0
      %700 = vmatmul.mubr.bf16.gmra.mrb[0].mxu0 %v634
      %v701 = vpop.f32.mrb[0].mxu0
      %v702 = vadd.f32 0.0, %v701
      %v703 = vpop.f32.mrb[0].mxu0
      %v704 = vpop.f32.mrb[0].mxu0
      %v705 = vadd.f32 0.0, %v704
      %v706 = vpop.f32.mrb[0].mxu0
      %707 = vmatprep.mubr.bf16.mxu0 0
      %708 = vmatmul.mubr.bf16.gmra.mrb[0].mxu0 %v637
      %v709 = vpop.f32.mrb[0].mxu0
      %v710 = vadd.f32 0.0, %v709
      %v711 = vpop.f32.mrb[0].mxu0
      %v712 = vpop.f32.mrb[0].mxu0
      %v713 = vadd.f32 0.0, %v712
      %v714 = vpop.f32.mrb[0].mxu0
      %715 = vmatprep.mubr.bf16.mxu0 0
      %716 = vmatmul.mubr.bf16.gmra.mrb[0].mxu0 %v640
      %v717 = vpop.f32.mrb[0].mxu0
      %v718 = vadd.f32 0.0, %v717
      %v719 = vpop.f32.mrb[0].mxu0
      %v720 = vpop.f32.mrb[0].mxu0
      %v721 = vadd.f32 0.0, %v720
      %v722 = vpop.f32.mrb[0].mxu0
      %723 = vmatprep.mubr.bf16.mxu0 0
      %724 = vmatmul.mubr.bf16.gmra.mrb[0].mxu0 %v643
      %v725 = vpop.f32.mrb[0].mxu0
      %v726 = vadd.f32 0.0, %v725
      %v727 = vpop.f32.mrb[0].mxu0
      %v728 = vpop.f32.mrb[0].mxu0
      %v729 = vadd.f32 0.0, %v728
      %v730 = vpop.f32.mrb[0].mxu0
      %731 = vmatprep.mubr.bf16.mxu0 0
      %732 = vmatmul.mubr.bf16.gmra.mrb[0].mxu0 %v646
      %v733 = vpop.f32.mrb[0].mxu0
      %v734 = vadd.f32 0.0, %v733
      %v735 = vpop.f32.mrb[0].mxu0
      %v736 = vpop.f32.mrb[0].mxu0
      %v737 = vadd.f32 0.0, %v736
      %v738 = vpop.f32.mrb[0].mxu0
      %739 = vmatprep.mubr.bf16.mxu0 0
      %740 = vmatmul.mubr.bf16.gmra.mrb[0].mxu0 %v649
      %v741 = vpop.f32.mrb[0].mxu0
      %v742 = vadd.f32 0.0, %v741
      %v743 = vpop.f32.mrb[0].mxu0
      %v744 = vpop.f32.mrb[0].mxu0
      %v745 = vadd.f32 0.0, %v744
      %v746 = vpop.f32.mrb[0].mxu0
      %747 = vdwg.mxu0
      %v748 = vmul.f32 %v439, %v686
      %v749 = vmul.f32 %v442, %v689
      %v750 = vmul.f32 %v447, %v694
      %v751 = vmul.f32 %v450, %v697
      %v752 = vmul.f32 %v455, %v702
      %v753 = vmul.f32 %v458, %v705
      %v754 = vmul.f32 %v463, %v710
      %v755 = vmul.f32 %v466, %v713
      %v756 = vmul.f32 %v471, %v718
      %v757 = vmul.f32 %v474, %v721
      %v758 = vmul.f32 %v479, %v726
      %v759 = vmul.f32 %v482, %v729
      %v760 = vmul.f32 %v487, %v734
      %v761 = vmul.f32 %v490, %v737
      %v762 = vmul.f32 %v495, %v742
      %v763 = vmul.f32 %v498, %v745
      %v764 = vlaneseq
      %v765 = vshrl.u32 %v764, 7
      %v766 = vadd.s32 %v765, 8
      %v767 = vlaneseq
      %v768 = vshrl.u32 %v767, 7
      %v769 = vsub.s32 0, %v768
      %v770 = vrot.slane %v517, %v769
      %vm771 = vcmp.eq.s32.totalorder %v765, %v770
      %vm772 = vcmp.eq.s32.totalorder %v766, %v770
      %v773 = vld [vmem:[#allocation3] sm:$0xff]
      %v774 = vld [vmem:[#allocation3 + $0x8] sm:$0xff]
      %v775 = vsel %vm771, 1, 0
      %v776 = vsel %vm772, 1, 0
      %v777 = vcvt.s32.f32 %v775
      %v778 = vcvt.s32.f32 %v776
      %v779 = vpack.c.bf16 %v778, %v777
      %v780 = vpack.c.bf16 %v749, %v748
      %v781 = vpack.c.bf16 %v751, %v750
      %v782 = vpack.c.bf16 %v753, %v752
      %v783 = vpack.c.bf16 %v755, %v754
      %v784 = vpack.c.bf16 %v757, %v756
      %v785 = vpack.c.bf16 %v759, %v758
      %v786 = vpack.c.bf16 %v761, %v760
      %v787 = vpack.c.bf16 %v763, %v762
      %788 = vmatprep.subr.bf16.mxu0 0
      %789 = vmatpush1.bf16.msra.mxu0 %v780
      %790 = vmatprep.subr.bf16.mxu0 0
      %791 = vmatpush1.bf16.msra.mxu0 %v781
      %792 = vmatprep.subr.bf16.mxu0 0
      %793 = vmatpush1.bf16.msra.mxu0 %v782
      %794 = vmatprep.subr.bf16.mxu0 0
      %795 = vmatpush1.bf16.msra.mxu0 %v783
      %796 = vmatprep.subr.bf16.mxu0 0
      %797 = vmatpush1.bf16.msra.mxu0 %v784
      %798 = vmatprep.subr.bf16.mxu0 0
      %799 = vmatpush1.bf16.msra.mxu0 %v785
      %800 = vmatprep.subr.bf16.mxu0 0
      %801 = vmatpush1.bf16.msra.mxu0 %v786
      %802 = vmatprep.subr.bf16.mxu0 0
      %803 = vmatpush1.bf16.msra.mxu0 %v787
      %804 = vmatprep.subr.bf16.mxu0 0
      %805 = vmatpush1.bf16.msra.mxu0 0
      %806 = vmatprep.subr.bf16.mxu0 0
      %807 = vmatpush1.bf16.msra.mxu0 0
      %808 = vmatprep.subr.bf16.mxu0 0
      %809 = vmatpush1.bf16.msra.mxu0 0
      %810 = vmatprep.subr.bf16.mxu0 0
      %811 = vmatpush1.bf16.msra.mxu0 0
      %812 = vmatprep.subr.bf16.mxu0 0
      %813 = vmatpush1.bf16.msra.mxu0 0
      %814 = vmatprep.subr.bf16.mxu0 0
      %815 = vmatpush1.bf16.msra.mxu0 0
      %816 = vmatprep.subr.bf16.mxu0 0
      %817 = vmatpush1.bf16.msra.mxu0 0
      %818 = vmatprep.subr.bf16.mxu0 0
      %819 = vmatpush1.bf16.msra.mxu0 0
      %820 = vmatprep.mubr.bf16.mxu0 0
      %821 = vmatmul.mubr.bf16.gmra.mrb[0].mxu0 %v779
      %v822 = vpop.f32.mrb[0].mxu0
      %v823 = vadd.f32 0.0, %v822
      %v824 = vpop.f32.mrb[0].mxu0
      %v825 = vpop.f32.mrb[0].mxu0
      %v826 = vadd.f32 0.0, %v825
      %v827 = vpop.f32.mrb[0].mxu0
      %828 = vdwg.mxu0
      %v829 = vadd.f32 %v773, %v823
      %v830 = vadd.f32 %v774, %v826
      %vm831 = vcmask 261120
      %832 = vst.msk [vmem:[#allocation3] sm:$0xff] %vm831, %v829
      %833 = vst.msk [vmem:[#allocation3 + $0x8] sm:$0xff] %vm831, %v830
      // Predicated region
      $region57: #{pmhci_forward.1} parent=47 // pred_check
        %p834 = pneg %p319
      $region58: #{pmhci_forward.1} parent=47 // pred_check_branch
        %836 = sbr.rel (%p834) target = $region60
      $region59: #{pmhci_forward.1} parent=47 // pred_region
        %v837 = vld [vmem:[#allocation3] sm:$0xff]
        %v838 = vld [vmem:[#allocation3 + $0x8] sm:$0xff]
        %v839 = vmul.f32 %v343, %v315
        %v840 = vmul.f32 %v349, %v315
        %v842 = vrot.slane %v840, 3
        %v844 = vadd.f32 %v839, %v842
        %v845 = vlaneseq
        %v846 = vshrl.u32 %v845, 7
        %v847 = vsub.s32 0, %v846
        %v848 = vrot.slane %v844, %v847
        %v849 = vadd.f32 %v837, %v848
        %v850 = vadd.f32 %v838, %v848
        %v851 = vsel %vm831, %v849, 0.0
        %852 = vadd.xlane.f32.xlu0 %v851
        %v853 = vpop.xlane.xlu0 %852
        %v854 = vsel %vm831, %v850, 0.0
        %855 = vadd.xlane.f32.xlu0 %v854
        %v856 = vpop.xlane.xlu0 %855
        %v857 = vrcp.pop 32.0
        %v858 = vmul.f32 %v853, %v857
        %v859 = vmul.f32 %v856, %v857
        %v860 = vsub.f32 %v849, %v858
        %v861 = vsub.f32 %v850, %v859
        %v862 = vmul.f32 %v860, %v860
        %v863 = vmul.f32 %v861, %v861
        %v864 = vsel %vm831, %v862, 0.0
        %865 = vadd.xlane.f32.xlu0 %v864
        %v866 = vpop.xlane.xlu0 %865
        %v867 = vsel %vm831, %v863, 0.0
        %868 = vadd.xlane.f32.xlu0 %v867
        %v869 = vpop.xlane.xlu0 %868
        %v870 = vmul.f32 %v866, %v857
        %v871 = vmul.f32 %v869, %v857
        %v872 = vadd.f32 %v870, 1e-05
        %v873 = vadd.f32 %v871, 1e-05
        %v874 = vrsqrt.pop %v872
        %v875 = vrsqrt.pop %v873
        %v876 = vmul.f32 %v860, %v874
        %v877 = vmul.f32 %v861, %v875
        %v878 = vld [vmem:[%s5 + $0x10] sm:$0xf]
        %v879 = vld [vmem:[%s5 + $0x14] sm:$0xf]
        %v880 = vld [vmem:[%s5 + $0x18] sm:$0xf]
        %v881 = vld [vmem:[%s5 + $0x1c] sm:$0xf]
        %v882 = vld [vmem:[%s5 + $0x60] sm:$0xf]
        %v883 = vld [vmem:[%s5 + $0x64] sm:$0xf]
        %v884 = vld [vmem:[%s5 + $0x68] sm:$0xf]
        %v885 = vld [vmem:[%s5 + $0x6c] sm:$0xf]
        %v886 = vunpack.c.l.bf16 %v878
        %v887 = vunpack.c.l.bf16 %v879
        %v888 = vunpack.c.l.bf16 %v880
        %v889 = vunpack.c.l.bf16 %v881
        %v890 = vmul.f32 %v343, %v886
        %v891 = vmul.f32 %v343, %v887
        %v892 = vmul.f32 %v343, %v888
        %v893 = vmul.f32 %v343, %v889
        %v894 = vunpack.c.l.bf16 %v882
        %v895 = vunpack.c.l.bf16 %v883
        %v896 = vunpack.c.l.bf16 %v884
        %v897 = vunpack.c.l.bf16 %v885
        %v898 = vmul.f32 %v349, %v894
        %v899 = vmul.f32 %v349, %v895
        %v900 = vmul.f32 %v349, %v896
        %v901 = vmul.f32 %v349, %v897
        %v902 = vadd.f32 %v890, %v898
        %v903 = vadd.f32 %v891, %v899
        %v904 = vadd.f32 %v892, %v900
        %v905 = vadd.f32 %v893, %v901
        %v906 = vpack.c.bf16 %v877, %v876
        %v907 = vpack.c.bf16 %v903, %v902
        %v908 = vpack.c.bf16 %v905, %v904
        %v909 = vlaneseq
        %v910 = vshrl.u32 %v909, 7
        %v911 = vsub.s32 1, %v910
        %v912 = vrot.slane %v844, %v911
        %v914 = vsel %vm831, %v906, 0
        %916 = vmatprep.subr.bf16.mxu0 0
        %917 = vmatpush1.bf16.msra.mxu0 %v907
        %918 = vmatprep.subr.bf16.mxu0 0
        %919 = vmatpush1.bf16.msra.mxu0 %v908
        %920 = vmatprep.subr.bf16.mxu0 0
        %921 = vmatpush1.bf16.msra.mxu0 0
        %922 = vmatprep.subr.bf16.mxu0 0
        %923 = vmatpush1.bf16.msra.mxu0 0
        %924 = vmatprep.subr.bf16.mxu0 0
        %925 = vmatpush1.bf16.msra.mxu0 0
        %926 = vmatprep.subr.bf16.mxu0 0
        %927 = vmatpush1.bf16.msra.mxu0 0
        %928 = vmatprep.subr.bf16.mxu0 0
        %929 = vmatpush1.bf16.msra.mxu0 0
        %930 = vmatprep.subr.bf16.mxu0 0
        %931 = vmatpush1.bf16.msra.mxu0 0
        %932 = vmatprep.subr.bf16.mxu0 0
        %933 = vmatpush1.bf16.msra.mxu0 0
        %934 = vmatprep.subr.bf16.mxu0 0
        %935 = vmatpush1.bf16.msra.mxu0 0
        %936 = vmatprep.subr.bf16.mxu0 0
        %937 = vmatpush1.bf16.msra.mxu0 0
        %938 = vmatprep.subr.bf16.mxu0 0
        %939 = vmatpush1.bf16.msra.mxu0 0
        %940 = vmatprep.subr.bf16.mxu0 0
        %941 = vmatpush1.bf16.msra.mxu0 0
        %942 = vmatprep.subr.bf16.mxu0 0
        %943 = vmatpush1.bf16.msra.mxu0 0
        %944 = vmatprep.subr.bf16.mxu0 0
        %945 = vmatpush1.bf16.msra.mxu0 0
        %946 = vmatprep.subr.bf16.mxu0 0
        %947 = vmatpush1.bf16.msra.mxu0 0
        %948 = vmatprep.mubr.bf16.mxu0 0
        %949 = vmatmul.mubr.bf16.gmra.mrb[0].mxu0 %v914
        %v950 = vpop.f32.mrb[0].mxu0
        %v951 = vadd.f32 %v912, %v950
        %v952 = vpop.f32.mrb[0].mxu0
        %v953 = vpop.f32.mrb[0].mxu0
        %v954 = vadd.f32 %v912, %v953
        %v955 = vpop.f32.mrb[0].mxu0
        %956 = vdwg.mxu0
        %v957 = vmax.f32 %v951, 0.0
        %v958 = vmax.f32 %v954, 0.0
        %v959 = vld [vmem:[%s5 + $0x20] sm:$0xf]
        %v960 = vld [vmem:[%s5 + $0x24] sm:$0xf]
        %v961 = vld [vmem:[%s5 + $0x28] sm:$0xf]
        %v962 = vld [vmem:[%s5 + $0x2c] sm:$0xf]
        %v963 = vld [vmem:[%s5 + $0x30] sm:$0xf]
        %v964 = vld [vmem:[%s5 + $0x34] sm:$0xf]
        %v965 = vld [vmem:[%s5 + $0x38] sm:$0xf]
        %v966 = vld [vmem:[%s5 + $0x3c] sm:$0xf]
        %v967 = vld [vmem:[%s5 + $0x40] sm:$0xf]
        %v968 = vld [vmem:[%s5 + $0x44] sm:$0xf]
        %v969 = vld [vmem:[%s5 + $0x48] sm:$0xf]
        %v970 = vld [vmem:[%s5 + $0x4c] sm:$0xf]
        %v971 = vld [vmem:[%s5 + $0x50] sm:$0xf]
        %v972 = vld [vmem:[%s5 + $0x54] sm:$0xf]
        %v973 = vld [vmem:[%s5 + $0x58] sm:$0xf]
        %v974 = vld [vmem:[%s5 + $0x5c] sm:$0xf]
        %v975 = vld [vmem:[%s5 + $0x70] sm:$0xf]
        %v976 = vld [vmem:[%s5 + $0x74] sm:$0xf]
        %v977 = vld [vmem:[%s5 + $0x78] sm:$0xf]
        %v978 = vld [vmem:[%s5 + $0x7c] sm:$0xf]
        %v979 = vld [vmem:[%s5 + $0x80] sm:$0xf]
        %v980 = vld [vmem:[%s5 + $0x84] sm:$0xf]
        %v981 = vld [vmem:[%s5 + $0x88] sm:$0xf]
        %v982 = vld [vmem:[%s5 + $0x8c] sm:$0xf]
        %v983 = vld [vmem:[%s5 + $0x90] sm:$0xf]
        %v984 = vld [vmem:[%s5 + $0x94] sm:$0xf]
        %v985 = vld [vmem:[%s5 + $0x98] sm:$0xf]
        %v986 = vld [vmem:[%s5 + $0x9c] sm:$0xf]
        %v987 = vld [vmem:[%s5 + $0xa0] sm:$0xf]
        %v988 = vld [vmem:[%s5 + $0xa4] sm:$0xf]
        %v989 = vld [vmem:[%s5 + $0xa8] sm:$0xf]
        %v990 = vld [vmem:[%s5 + $0xac] sm:$0xf]
        %v991 = vunpack.c.l.bf16 %v959
        %v992 = vunpack.c.l.bf16 %v960
        %v993 = vunpack.c.l.bf16 %v961
        %v994 = vunpack.c.l.bf16 %v962
        %v995 = vunpack.c.l.bf16 %v963
        %v996 = vunpack.c.l.bf16 %v964
        %v997 = vunpack.c.l.bf16 %v965
        %v998 = vunpack.c.l.bf16 %v966
        %v999 = vunpack.c.l.bf16 %v967
        %v1000 = vunpack.c.l.bf16 %v968
        %v1001 = vunpack.c.l.bf16 %v969
        %v1002 = vunpack.c.l.bf16 %v970
        %v1003 = vunpack.c.l.bf16 %v971
        %v1004 = vunpack.c.l.bf16 %v972
        %v1005 = vunpack.c.l.bf16 %v973
        %v1006 = vunpack.c.l.bf16 %v974
        %v1007 = vmul.f32 %v343, %v991
        %v1008 = vmul.f32 %v343, %v992
        %v1009 = vmul.f32 %v343, %v993
        %v1010 = vmul.f32 %v343, %v994
        %v1011 = vmul.f32 %v343, %v995
        %v1012 = vmul.f32 %v343, %v996
        %v1013 = vmul.f32 %v343, %v997
        %v1014 = vmul.f32 %v343, %v998
        %v1015 = vmul.f32 %v343, %v999
        %v1016 = vmul.f32 %v343, %v1000
        %v1017 = vmul.f32 %v343, %v1001
        %v1018 = vmul.f32 %v343, %v1002
        %v1019 = vmul.f32 %v343, %v1003
        %v1020 = vmul.f32 %v343, %v1004
        %v1021 = vmul.f32 %v343, %v1005
        %v1022 = vmul.f32 %v343, %v1006
        %v1023 = vunpack.c.l.bf16 %v975
        %v1024 = vunpack.c.l.bf16 %v976
        %v1025 = vunpack.c.l.bf16 %v977
        %v1026 = vunpack.c.l.bf16 %v978
        %v1027 = vunpack.c.l.bf16 %v979
        %v1028 = vunpack.c.l.bf16 %v980
        %v1029 = vunpack.c.l.bf16 %v981
        %v1030 = vunpack.c.l.bf16 %v982
        %v1031 = vunpack.c.l.bf16 %v983
        %v1032 = vunpack.c.l.bf16 %v984
        %v1033 = vunpack.c.l.bf16 %v985
        %v1034 = vunpack.c.l.bf16 %v986
        %v1035 = vunpack.c.l.bf16 %v987
        %v1036 = vunpack.c.l.bf16 %v988
        %v1037 = vunpack.c.l.bf16 %v989
        %v1038 = vunpack.c.l.bf16 %v990
        %v1039 = vmul.f32 %v349, %v1023
        %v1040 = vmul.f32 %v349, %v1024
        %v1041 = vmul.f32 %v349, %v1025
        %v1042 = vmul.f32 %v349, %v1026
        %v1043 = vmul.f32 %v349, %v1027
        %v1044 = vmul.f32 %v349, %v1028
        %v1045 = vmul.f32 %v349, %v1029
        %v1046 = vmul.f32 %v349, %v1030
        %v1047 = vmul.f32 %v349, %v1031
        %v1048 = vmul.f32 %v349, %v1032
        %v1049 = vmul.f32 %v349, %v1033
        %v1050 = vmul.f32 %v349, %v1034
        %v1051 = vmul.f32 %v349, %v1035
        %v1052 = vmul.f32 %v349, %v1036
        %v1053 = vmul.f32 %v349, %v1037
        %v1054 = vmul.f32 %v349, %v1038
        %v1055 = vadd.f32 %v1007, %v1039
        %v1056 = vadd.f32 %v1008, %v1040
        %v1057 = vadd.f32 %v1009, %v1041
        %v1058 = vadd.f32 %v1010, %v1042
        %v1059 = vadd.f32 %v1011, %v1043
        %v1060 = vadd.f32 %v1012, %v1044
        %v1061 = vadd.f32 %v1013, %v1045
        %v1062 = vadd.f32 %v1014, %v1046
        %v1063 = vadd.f32 %v1015, %v1047
        %v1064 = vadd.f32 %v1016, %v1048
        %v1065 = vadd.f32 %v1017, %v1049
        %v1066 = vadd.f32 %v1018, %v1050
        %v1067 = vadd.f32 %v1019, %v1051
        %v1068 = vadd.f32 %v1020, %v1052
        %v1069 = vadd.f32 %v1021, %v1053
        %v1070 = vadd.f32 %v1022, %v1054
        %v1071 = vpack.c.bf16 %v958, %v957
        %v1072 = vpack.c.bf16 %v1056, %v1055
        %v1073 = vpack.c.bf16 %v1058, %v1057
        %v1074 = vpack.c.bf16 %v1060, %v1059
        %v1075 = vpack.c.bf16 %v1062, %v1061
        %v1076 = vpack.c.bf16 %v1064, %v1063
        %v1077 = vpack.c.bf16 %v1066, %v1065
        %v1078 = vpack.c.bf16 %v1068, %v1067
        %v1079 = vpack.c.bf16 %v1070, %v1069
        %v1080 = vlaneseq
        %v1081 = vshrl.u32 %v1080, 7
        %v1082 = vsub.s32 2, %v1081
        %v1083 = vrot.slane %v844, %v1082
        %1084 = vmatprep.subr.bf16.mxu0 0
        %1085 = vmatpush1.bf16.msra.mxu0 %v1072
        %1086 = vmatprep.subr.bf16.mxu0 0
        %1087 = vmatpush1.bf16.msra.mxu0 %v1073
        %1088 = vmatprep.subr.bf16.mxu0 0
        %1089 = vmatpush1.bf16.msra.mxu0 %v1074
        %1090 = vmatprep.subr.bf16.mxu0 0
        %1091 = vmatpush1.bf16.msra.mxu0 %v1075
        %1092 = vmatprep.subr.bf16.mxu0 0
        %1093 = vmatpush1.bf16.msra.mxu0 %v1076
        %1094 = vmatprep.subr.bf16.mxu0 0
        %1095 = vmatpush1.bf16.msra.mxu0 %v1077
        %1096 = vmatprep.subr.bf16.mxu0 0
        %1097 = vmatpush1.bf16.msra.mxu0 %v1078
        %1098 = vmatprep.subr.bf16.mxu0 0
        %1099 = vmatpush1.bf16.msra.mxu0 %v1079
        %1100 = vmatprep.subr.bf16.mxu0 0
        %1101 = vmatpush1.bf16.msra.mxu0 0
        %1102 = vmatprep.subr.bf16.mxu0 0
        %1103 = vmatpush1.bf16.msra.mxu0 0
        %1104 = vmatprep.subr.bf16.mxu0 0
        %1105 = vmatpush1.bf16.msra.mxu0 0
        %1106 = vmatprep.subr.bf16.mxu0 0
        %1107 = vmatpush1.bf16.msra.mxu0 0
        %1108 = vmatprep.subr.bf16.mxu0 0
        %1109 = vmatpush1.bf16.msra.mxu0 0
        %1110 = vmatprep.subr.bf16.mxu0 0
        %1111 = vmatpush1.bf16.msra.mxu0 0
        %1112 = vmatprep.subr.bf16.mxu0 0
        %1113 = vmatpush1.bf16.msra.mxu0 0
        %1114 = vmatprep.subr.bf16.mxu0 0
        %1115 = vmatpush1.bf16.msra.mxu0 0
        %1116 = vmatprep.mubr.bf16.mxu0 0
        %1117 = vmatmul.mubr.bf16.gmra.mrb[0].mxu0 %v1071
        %v1118 = vpop.f32.mrb[0].mxu0
        %v1119 = vadd.f32 %v1083, %v1118
        %v1120 = vpop.f32.mrb[0].mxu0
        %v1121 = vpop.f32.mrb[0].mxu0
        %v1122 = vadd.f32 %v1083, %v1121
        %v1123 = vpop.f32.mrb[0].mxu0
        %1124 = vdwg.mxu0
        %v1125 = vld [vmem:[#allocation2] sm:$0xff]
        %v1126 = vld [vmem:[#allocation2 + $0x8] sm:$0xff]
        %v1127 = vadd.f32 %v1125, %v1119
        %v1128 = vadd.f32 %v1126, %v1122
        %1129 = vst.msk [vmem:[#allocation2] sm:$0xff] %vm831, %v1127
        %1130 = vst.msk [vmem:[#allocation2 + $0x8] sm:$0xff] %vm831, %v1128
        %p1131 = scmp.eq.s32.totalorder %s22, 1
        // Predicated region
        $region61: #{pmhci_forward.1} parent=59 // pred_check
          %p1132 = pneg %p1131
        $region62: #{pmhci_forward.1} parent=59 // pred_check_branch
          %1134 = sbr.rel (%p1132) target = $region64
        $region63: #{pmhci_forward.1} parent=59 // pred_region
          %v1135 = vld [vmem:[%s4] sm:$0x1]
          %v1136 = vlaneseq
          %v1137 = vshrl.u32 %v1136, 7
          %v1138 = vsub.s32 0, %v1137
          %v1139 = vrot.slane %v1135, %v1138
          %vm1140 = vcmp.eq.s32.totalorder %v765, %v1139
          %v1141 = vsel %vm1140, 1, 0
          %v1142 = vcvt.s32.f32 %v1141
          %vm1143 = vcmask 123904
          %v1144 = vsel %vm1143, %v1142, 0.0
          %1145 = vadd.xlane.f32.xlu0 %v1144
          %v1146 = vpop.xlane.xlu0 %1145
          %v1147 = vpack.c.bf16 %v1142, %v1142
          %v1148 = vpack.c.bf16 %v1128, %v1127
          %v1150 = vsel %vm379, %v1147, 0
          %1152 = vmatprep.subr.bf16.mxu0 0
          %1153 = vmatpush1.bf16.msra.mxu0 %v1148
          %1154 = vmatprep.subr.bf16.mxu0 0
          %1155 = vmatpush1.bf16.msra.mxu0 0
          %1156 = vmatprep.subr.bf16.mxu0 0
          %1157 = vmatpush1.bf16.msra.mxu0 0
          %1158 = vmatprep.subr.bf16.mxu0 0
          %1159 = vmatpush1.bf16.msra.mxu0 0
          %1160 = vmatprep.subr.bf16.mxu0 0
          %1161 = vmatpush1.bf16.msra.mxu0 0
          %1162 = vmatprep.subr.bf16.mxu0 0
          %1163 = vmatpush1.bf16.msra.mxu0 0
          %1164 = vmatprep.subr.bf16.mxu0 0
          %1165 = vmatpush1.bf16.msra.mxu0 0
          %1166 = vmatprep.subr.bf16.mxu0 0
          %1167 = vmatpush1.bf16.msra.mxu0 0
          %1168 = vmatprep.subr.bf16.mxu0 0
          %1169 = vmatpush1.bf16.msra.mxu0 0
          %1170 = vmatprep.subr.bf16.mxu0 0
          %1171 = vmatpush1.bf16.msra.mxu0 0
          %1172 = vmatprep.subr.bf16.mxu0 0
          %1173 = vmatpush1.bf16.msra.mxu0 0
          %1174 = vmatprep.subr.bf16.mxu0 0
          %1175 = vmatpush1.bf16.msra.mxu0 0
          %1176 = vmatprep.subr.bf16.mxu0 0
          %1177 = vmatpush1.bf16.msra.mxu0 0
          %1178 = vmatprep.subr.bf16.mxu0 0
          %1179 = vmatpush1.bf16.msra.mxu0 0
          %1180 = vmatprep.subr.bf16.mxu0 0
          %1181 = vmatpush1.bf16.msra.mxu0 0
          %1182 = vmatprep.subr.bf16.mxu0 0
          %1183 = vmatpush1.bf16.msra.mxu0 0
          %1184 = vmatprep.mubr.bf16.mxu0 0
          %1185 = vmatmul.mubr.bf16.gmra.mrb[0].mxu0 %v1150
          %v1186 = vpop.f32.mrb[0].mxu0
          %v1187 = vadd.f32 0.0, %v1186
          %v1188 = vpop.f32.mrb[0].mxu0
          %v1189 = vpop.f32.mrb[0].mxu0
          %v1190 = vpop.f32.mrb[0].mxu0
          %1191 = vdwg.mxu0
          %v1192 = vmax.f32 %v1146, 1.0
          %v1193 = vrcp.pop %v1192
          %v1194 = vmul.f32 %v1187, %v1193
          %v1195 = vld [vmem:[%s5 + $0xb0] sm:$0xf]
          %v1196 = vld [vmem:[%s5 + $0xb4] sm:$0xf]
          %v1197 = vld [vmem:[%s5 + $0xb8] sm:$0xf]
          %v1198 = vld [vmem:[%s5 + $0xbc] sm:$0xf]
          %v1199 = vpack.c.bf16 %v1194, %v1194
          %v1200 = vlaneseq
          %v1201 = vshrl.u32 %v1200, 7
          %v1202 = vsub.s32 6, %v1201
          %v1203 = vrot.slane %v315, %v1202
          %v1208 = vunpack.c.l.b16 %v1195
          %v1209 = vunpack.c.l.b16 %v1196
          %v1210 = vunpack.c.l.b16 %v1197
          %v1211 = vunpack.c.l.b16 %v1198
          %v1212 = vpack.c.b16 %v1209, %v1208
          %v1213 = vpack.c.b16 %v1211, %v1210
          %v1217 = vsel %vm831, %v1199, 0
          %1219 = vmatprep.subr.bf16.mxu0 0
          %1220 = vmatpush1.bf16.msra.mxu0 %v1212
          %1221 = vmatprep.subr.bf16.mxu0 0
          %1222 = vmatpush1.bf16.msra.mxu0 %v1213
          %1223 = vmatprep.subr.bf16.mxu0 0
          %1224 = vmatpush1.bf16.msra.mxu0 0
          %1225 = vmatprep.subr.bf16.mxu0 0
          %1226 = vmatpush1.bf16.msra.mxu0 0
          %1227 = vmatprep.subr.bf16.mxu0 0
          %1228 = vmatpush1.bf16.msra.mxu0 0
          %1229 = vmatprep.subr.bf16.mxu0 0
          %1230 = vmatpush1.bf16.msra.mxu0 0
          %1231 = vmatprep.subr.bf16.mxu0 0
          %1232 = vmatpush1.bf16.msra.mxu0 0
          %1233 = vmatprep.subr.bf16.mxu0 0
          %1234 = vmatpush1.bf16.msra.mxu0 0
          %1235 = vmatprep.subr.bf16.mxu0 0
          %1236 = vmatpush1.bf16.msra.mxu0 0
          %1237 = vmatprep.subr.bf16.mxu0 0
          %1238 = vmatpush1.bf16.msra.mxu0 0
          %1239 = vmatprep.subr.bf16.mxu0 0
          %1240 = vmatpush1.bf16.msra.mxu0 0
          %1241 = vmatprep.subr.bf16.mxu0 0
          %1242 = vmatpush1.bf16.msra.mxu0 0
          %1243 = vmatprep.subr.bf16.mxu0 0
          %1244 = vmatpush1.bf16.msra.mxu0 0
          %1245 = vmatprep.subr.bf16.mxu0 0
          %1246 = vmatpush1.bf16.msra.mxu0 0
          %1247 = vmatprep.subr.bf16.mxu0 0
          %1248 = vmatpush1.bf16.msra.mxu0 0
          %1249 = vmatprep.subr.bf16.mxu0 0
          %1250 = vmatpush1.bf16.msra.mxu0 0
          %1251 = vmatprep.mubr.bf16.mxu0 0
          %1252 = vmatmul.mubr.bf16.gmra.mrb[0].mxu0 %v1217
          %v1253 = vpop.f32.mrb[0].mxu0
          %v1254 = vadd.f32 %v1203, %v1253
          %v1255 = vpop.f32.mrb[0].mxu0
          %v1256 = vpop.f32.mrb[0].mxu0
          %v1257 = vpop.f32.mrb[0].mxu0
          %1258 = vdwg.mxu0
          %v1259 = vmax.f32 %v1254, 0.0
          %v1260 = vld [vmem:[%s5 + $0xc0] sm:$0xf]
          %v1261 = vld [vmem:[%s5 + $0xc4] sm:$0xf]
          %v1262 = vld [vmem:[%s5 + $0xc8] sm:$0xf]
          %v1263 = vld [vmem:[%s5 + $0xcc] sm:$0xf]
          %v1264 = vld [vmem:[%s5 + $0xd0] sm:$0xf]
          %v1265 = vld [vmem:[%s5 + $0xd4] sm:$0xf]
          %v1266 = vld [vmem:[%s5 + $0xd8] sm:$0xf]
          %v1267 = vld [vmem:[%s5 + $0xdc] sm:$0xf]
          %v1268 = vld [vmem:[%s5 + $0xe0] sm:$0xf]
          %v1269 = vld [vmem:[%s5 + $0xe4] sm:$0xf]
          %v1270 = vld [vmem:[%s5 + $0xe8] sm:$0xf]
          %v1271 = vld [vmem:[%s5 + $0xec] sm:$0xf]
          %v1272 = vld [vmem:[%s5 + $0xf0] sm:$0xf]
          %v1273 = vld [vmem:[%s5 + $0xf4] sm:$0xf]
          %v1274 = vld [vmem:[%s5 + $0xf8] sm:$0xf]
          %v1275 = vld [vmem:[%s5 + $0xfc] sm:$0xf]
          %v1276 = vpack.c.bf16 %v1259, %v1259
          %v1277 = vlaneseq
          %v1278 = vshrl.u32 %v1277, 7
          %v1279 = vsub.s32 7, %v1278
          %v1280 = vrot.slane %v315, %v1279
          %v1297 = vunpack.c.l.b16 %v1260
          %v1298 = vunpack.c.l.b16 %v1261
          %v1299 = vunpack.c.l.b16 %v1262
          %v1300 = vunpack.c.l.b16 %v1263
          %v1301 = vunpack.c.l.b16 %v1264
          %v1302 = vunpack.c.l.b16 %v1265
          %v1303 = vunpack.c.l.b16 %v1266
          %v1304 = vunpack.c.l.b16 %v1267
          %v1305 = vunpack.c.l.b16 %v1268
          %v1306 = vunpack.c.l.b16 %v1269
          %v1307 = vunpack.c.l.b16 %v1270
          %v1308 = vunpack.c.l.b16 %v1271
          %v1309 = vunpack.c.l.b16 %v1272
          %v1310 = vunpack.c.l.b16 %v1273
          %v1311 = vunpack.c.l.b16 %v1274
          %v1312 = vunpack.c.l.b16 %v1275
          %v1313 = vpack.c.b16 %v1298, %v1297
          %v1314 = vpack.c.b16 %v1300, %v1299
          %v1315 = vpack.c.b16 %v1302, %v1301
          %v1316 = vpack.c.b16 %v1304, %v1303
          %v1317 = vpack.c.b16 %v1306, %v1305
          %v1318 = vpack.c.b16 %v1308, %v1307
          %v1319 = vpack.c.b16 %v1310, %v1309
          %v1320 = vpack.c.b16 %v1312, %v1311
          %1329 = vmatprep.subr.bf16.mxu0 0
          %1330 = vmatpush1.bf16.msra.mxu0 %v1313
          %1331 = vmatprep.subr.bf16.mxu0 0
          %1332 = vmatpush1.bf16.msra.mxu0 %v1314
          %1333 = vmatprep.subr.bf16.mxu0 0
          %1334 = vmatpush1.bf16.msra.mxu0 %v1315
          %1335 = vmatprep.subr.bf16.mxu0 0
          %1336 = vmatpush1.bf16.msra.mxu0 %v1316
          %1337 = vmatprep.subr.bf16.mxu0 0
          %1338 = vmatpush1.bf16.msra.mxu0 %v1317
          %1339 = vmatprep.subr.bf16.mxu0 0
          %1340 = vmatpush1.bf16.msra.mxu0 %v1318
          %1341 = vmatprep.subr.bf16.mxu0 0
          %1342 = vmatpush1.bf16.msra.mxu0 %v1319
          %1343 = vmatprep.subr.bf16.mxu0 0
          %1344 = vmatpush1.bf16.msra.mxu0 %v1320
          %1345 = vmatprep.subr.bf16.mxu0 0
          %1346 = vmatpush1.bf16.msra.mxu0 0
          %1347 = vmatprep.subr.bf16.mxu0 0
          %1348 = vmatpush1.bf16.msra.mxu0 0
          %1349 = vmatprep.subr.bf16.mxu0 0
          %1350 = vmatpush1.bf16.msra.mxu0 0
          %1351 = vmatprep.subr.bf16.mxu0 0
          %1352 = vmatpush1.bf16.msra.mxu0 0
          %1353 = vmatprep.subr.bf16.mxu0 0
          %1354 = vmatpush1.bf16.msra.mxu0 0
          %1355 = vmatprep.subr.bf16.mxu0 0
          %1356 = vmatpush1.bf16.msra.mxu0 0
          %1357 = vmatprep.subr.bf16.mxu0 0
          %1358 = vmatpush1.bf16.msra.mxu0 0
          %1359 = vmatprep.subr.bf16.mxu0 0
          %1360 = vmatpush1.bf16.msra.mxu0 0
          %1361 = vmatprep.mubr.bf16.mxu0 0
          %1362 = vmatmul.mubr.bf16.gmra.mrb[0].mxu0 %v1276
          %v1363 = vpop.f32.mrb[0].mxu0
          %v1364 = vadd.f32 %v1280, %v1363
          %v1365 = vpop.f32.mrb[0].mxu0
          %v1366 = vpop.f32.mrb[0].mxu0
          %v1367 = vpop.f32.mrb[0].mxu0
          %1368 = vdwg.mxu0
          %vm1369 = vcmask 1024
          %1370 = vst.msk [vmem:[%s7] sm:$0x3] %vm1369, %v1364
        $region64: #{pmhci_forward.1} parent=59 // pred_fallthru
          _
      $region60: #{pmhci_forward.1} parent=47 // pred_fallthru
        _
      // Predicated region
      $region65: #{pmhci_forward.1} parent=47 // pred_check
        %p1371 = pneg %p205
      $region66: #{pmhci_forward.1} parent=47 // pred_check_branch
        %1373 = sbr.rel (%p1371) target = $region68
      $region67: #{pmhci_forward.1} parent=47 // pred_region
        _
      $region68: #{pmhci_forward.1} parent=47 // pred_fallthru
        _
      // Predicated region
      $region69: #{pmhci_forward.1} parent=47 // pred_check
        %p1374 = pneg %p205
      $region70: #{pmhci_forward.1} parent=47 // pred_check_branch
        %1376 = sbr.rel (%p1374) target = $region72
      $region71: #{pmhci_forward.1} parent=47 // pred_region
        _
      $region72: #{pmhci_forward.1} parent=47 // pred_fallthru
        _
    $region48: #{pmhci_forward.1} parent=5 // pred_fallthru
      _
    %p1377 = scmp.le.s32.totalorder 2, %s13
    // Predicated region
    $region73: #{pmhci_forward.1} parent=5 // pred_check
      %p1378 = pneg %p1377
    $region74: #{pmhci_forward.1} parent=5 // pred_check_branch
      %1380 = sbr.rel (%p1378) target = $region76
    $region75: #{pmhci_forward.1} parent=5 // pred_region
      %s1381 = ssub.s32 %s13, 2
    $region76: #{pmhci_forward.1} parent=5 // pred_fallthru
      _
  $region6: #{pmhci_forward.1} parent=0 // loop_footer
    %s17 = sadd.s32 1, %s13
  $region7: #{pmhci_forward.1} parent=0 // loop_footer_branch
    %12 = sbr.rel target = $region3
  $region8: #{pmhci_forward.1} parent=0 // loop_exit
    _

</llo_original>
